<compile_context>
chip_gen: v7x
topology: tpu7x:2x2x1
jax: 0.10.0
libtpu: 0.0.40
codegen_flags: <defaults>
</compile_context>

<pallas_src>
import jax
import jax.numpy as jnp
from jax import lax
from jax.experimental import pallas as pl
from jax.experimental.pallas import tpu as pltpu

IN_FEATURES = 3 * 32 * 32          # 3072
OUT_FEATURES = 10


def linear_kernel(x_ref, w_ref, b_ref, o_ref):
    # x_ref: (B, 3072) bf16
    # w_ref: (3072, 10) bf16  (K-major, pre-transposed at prep time)
    # b_ref: (1, 10)   f32
    # o_ref: (B, 10)   f32
    acc = lax.dot_general(
        x_ref[...], w_ref[...],
        dimension_numbers=(((1,), (0,)), ((), ())),   # canonical [M,K] x [K,N]
        preferred_element_type=jnp.float32,           # f32 MXU accumulation
    )
    o_ref[...] = (acc + b_ref[...]).astype(o_ref.dtype)


def prepare_params(weight, bias):
    """One-time parameter prep (outside the hot path).

    weight: [10, 3072] f32 (nn.Linear layout), bias: [10] f32.
    Returns w_t: [3072, 10] bf16 (K-major), b2: [1, 10] f32.
    """
    w_t = jnp.asarray(weight).T.astype(jnp.bfloat16)   # K-major + halve HBM bytes
    b2 = jnp.asarray(bias).reshape(1, -1).astype(jnp.float32)
    return w_t, b2


def dummy_model_forward(x, w_t, b2):
    """x: [B, 3, 32, 32] float32 (NCHW). Returns [B, OUT_FEATURES] float32."""
    B = x.shape[0]
    x_flat = x.reshape(B, -1).astype(jnp.bfloat16)     # nn.Flatten(): [B, 3072]

    # Gridless single invocation: everything is VMEM-resident on all
    # generations (well under v7x's 64 MiB / 32 MiB scoped default).
    return pl.pallas_call(
        linear_kernel,
        out_shape=jax.ShapeDtypeStruct((B, OUT_FEATURES), jnp.float32),
        in_specs=[
            pl.BlockSpec(memory_space=pltpu.MemorySpace.VMEM),
            pl.BlockSpec(memory_space=pltpu.MemorySpace.VMEM),
            pl.BlockSpec(memory_space=pltpu.MemorySpace.VMEM),
        ],
        out_specs=pl.BlockSpec(memory_space=pltpu.MemorySpace.VMEM),
    )(x_flat, w_t, b2)


if __name__ == "__main__":
    key = jax.random.PRNGKey(0)
    k_x, k_w, k_b = jax.random.split(key, 3)

    # Shapes consistent with Linear(3072, 10): 3072 = 3 * 32 * 32, batch = 2.
    B, C, H, W = 2, 3, 32, 32
    x = jax.random.normal(k_x, (B, C, H, W), dtype=jnp.float32)

    # Deterministic parameters (nn.Linear shapes: weight [10, 3072], bias [10]).
    bound = 1.0 / (IN_FEATURES ** 0.5)
    weight = jax.random.uniform(
        k_w, (OUT_FEATURES, IN_FEATURES), dtype=jnp.float32,
        minval=-bound, maxval=bound)
    bias = jax.random.uniform(
        k_b, (OUT_FEATURES,), dtype=jnp.float32, minval=-bound, maxval=bound)

    # One-time parameter prep (transpose + bf16 cast), outside the hot path.
    w_t, b2 = prepare_params(weight, bias)

    y = dummy_model_forward(x, w_t, b2)
    jax.block_until_ready(y)

    # Sanity check against plain-JAX f32 reference of the PyTorch forward.
    # Tolerance loosened vs. the f32 version because inputs/weights are bf16
    # (f32 accumulation keeps the error well within a few 1e-3).
    y_ref = x.reshape(B, -1) @ weight.T + bias
    assert y.shape == (B, OUT_FEATURES)
    assert jnp.allclose(y, y_ref, atol=2e-2, rtol=2e-2)

    print("KERNEL_OK")
</pallas_src>

<mosaic_0001>
module attributes {stable_mosaic.version = 11 : i64} {
  func.func @linear_kernel(%arg0: memref<2x3072xbf16, #tpu.memory_space<vmem>>, %arg1: memref<3072x10xbf16, #tpu.memory_space<vmem>>, %arg2: memref<1x10xf32, #tpu.memory_space<vmem>>, %arg3: memref<2x10xf32, #tpu.memory_space<vmem>>) attributes {dimension_semantics = [], scalar_prefetch = 0 : i64, scratch_operands = 0 : i64, tpu.core_type = #tpu.core_type<tc>} {
    %c0 = arith.constant 0 : index
    %c0_0 = arith.constant 0 : index
    %0 = vector.load %arg0[%c0, %c0_0] : memref<2x3072xbf16, #tpu.memory_space<vmem>>, vector<2x3072xbf16>
    %c0_1 = arith.constant 0 : index
    %c0_2 = arith.constant 0 : index
    %1 = vector.load %arg1[%c0_1, %c0_2] : memref<3072x10xbf16, #tpu.memory_space<vmem>>, vector<3072x10xbf16>
    %cst = arith.constant dense<0.000000e+00> : vector<2x10xf32>
    %2 = tpu.matmul %0, %1, %cst {dimension_numbers = #tpu.dot_dimension_numbers<[1], [0], [0], [1], [0, 0, 1, 1], [], []>} : vector<2x3072xbf16>, vector<3072x10xbf16>, vector<2x10xf32> -> vector<2x10xf32>
    %c0_3 = arith.constant 0 : index
    %c0_4 = arith.constant 0 : index
    %3 = vector.load %arg2[%c0_3, %c0_4] : memref<1x10xf32, #tpu.memory_space<vmem>>, vector<1x10xf32>
    %4 = vector.broadcast %3 : vector<1x10xf32> to vector<2x10xf32>
    %5 = arith.addf %2, %4 : vector<2x10xf32>
    %c0_5 = arith.constant 0 : index
    %c0_6 = arith.constant 0 : index
    %6 = vector.load %arg3[%c0_5, %c0_6] : memref<2x10xf32, #tpu.memory_space<vmem>>, vector<2x10xf32>
    tpu.vector_store %arg3[%c0_5, %c0_6], %5 {strides = array<i32>} : memref<2x10xf32, #tpu.memory_space<vmem>>, vector<2x10xf32>,
    return
  }
}

</mosaic_0001>

<llo_original>
// kernel: tpu_custom_call.1
$region0: #{tpu_custom_call.1}
  #allocation0 [shape = 'u32[]', space=smem, size = 0x4, offset = 0x4, fixed_abs, tag = 'smem constant byte address 0x4 - core index']
  #allocation1 [shape = 'u32[144,128]{1,0:T(1,128)}', space=vmem, size = 0x12000, scoped, tag = 'internal scratch']
  %s0 = inlined_call_operand.vmem [shape: bf16[2,3072], index: 0, kind: input, shape index: {}]
  %s1 = inlined_call_operand.vmem [shape: bf16[3072,10], index: 1, kind: input, shape index: {}]
  %s2 = inlined_call_operand.vmem [shape: f32[1,10], index: 2, kind: input, shape index: {}]
  %s3 = inlined_call_operand.hbm [shape: f32[2,10], index: 3, kind: output, shape index: {}]
  %s4 = sld [smem:[#allocation0]]
  $region22: #{tpu_custom_call.1} parent=0
    _
  %s6 = ssub.s32 1, %s4
  %s7 = scalar_select 0, %s6, %s4
  $region1: #{tpu_custom_call.1} parent=0
    #allocation2 [shape = 'u8[1024]{0}', space=vmem, size = 0x400, scoped, tag = 'output window, operand 0, single buffered']
    #allocation3 [shape = 's32[1]{0}', space=sflag, size = 0x4, scoped, tag = 'scoped memory for tpu_custom_call.1']
    %8 = vsyncpa [#allocation3], 0
    // Predicated region
    $region2: #{tpu_custom_call.1} parent=1 // pred_check
      _
    $region3: #{tpu_custom_call.1} parent=1 // pred_check_branch
      %10 = sbr.rel (0) target = $region5
    $region4: #{tpu_custom_call.1} parent=1 // pred_region
      _
    $region5: #{tpu_custom_call.1} parent=1 // pred_fallthru
      _
    // Predicated region
    $region6: #{tpu_custom_call.1} parent=1 // pred_check
      _
    $region7: #{tpu_custom_call.1} parent=1 // pred_check_branch
      %12 = sbr.rel (0) target = $region9
    $region8: #{tpu_custom_call.1} parent=1 // pred_region
      _
    $region9: #{tpu_custom_call.1} parent=1 // pred_fallthru
      _
    // Predicated region
    $region10: #{tpu_custom_call.1} parent=1 // pred_check
      _
    $region11: #{tpu_custom_call.1} parent=1 // pred_check_branch
      %14 = sbr.rel (0) target = $region13
    $region12: #{tpu_custom_call.1} parent=1 // pred_region
      _
    $region13: #{tpu_custom_call.1} parent=1 // pred_fallthru
      _
    %v16 = vld [vmem:[%s0] sm:$0xff]
    %v17 = vld [vmem:[%s0 + $0x8] sm:$0xff]
    %v18 = vld [vmem:[%s0 + $0x10] sm:$0xff]
    %v19 = vld [vmem:[%s1] sm:$0xf]
    %v20 = vld [vmem:[%s1 + $0x4] sm:$0xf]
    %v21 = vld [vmem:[%s1 + $0x8] sm:$0xf]
    %v22 = vld [vmem:[%s1 + $0xc] sm:$0xf]
    %v23 = vld [vmem:[%s1 + $0x10] sm:$0xf]
    %v24 = vld [vmem:[%s1 + $0x14] sm:$0xf]
    %v25 = vld [vmem:[%s1 + $0x18] sm:$0xf]
    %v26 = vld [vmem:[%s1 + $0x1c] sm:$0xf]
    %v27 = vld [vmem:[%s1 + $0x20] sm:$0xf]
    %v28 = vld [vmem:[%s1 + $0x24] sm:$0xf]
    %v29 = vld [vmem:[%s1 + $0x28] sm:$0xf]
    %v30 = vld [vmem:[%s1 + $0x2c] sm:$0xf]
    %v31 = vld [vmem:[%s1 + $0x30] sm:$0xf]
    %v32 = vld [vmem:[%s1 + $0x34] sm:$0xf]
    %v33 = vld [vmem:[%s1 + $0x38] sm:$0xf]
    %v34 = vld [vmem:[%s1 + $0x3c] sm:$0xf]
    %v35 = vld [vmem:[%s1 + $0x40] sm:$0xf]
    %v36 = vld [vmem:[%s1 + $0x44] sm:$0xf]
    %v37 = vld [vmem:[%s1 + $0x48] sm:$0xf]
    %v38 = vld [vmem:[%s1 + $0x4c] sm:$0xf]
    %v39 = vld [vmem:[%s1 + $0x50] sm:$0xf]
    %v40 = vld [vmem:[%s1 + $0x54] sm:$0xf]
    %v41 = vld [vmem:[%s1 + $0x58] sm:$0xf]
    %v42 = vld [vmem:[%s1 + $0x5c] sm:$0xf]
    %v43 = vld [vmem:[%s1 + $0x60] sm:$0xf]
    %v44 = vld [vmem:[%s1 + $0x64] sm:$0xf]
    %v45 = vld [vmem:[%s1 + $0x68] sm:$0xf]
    %v46 = vld [vmem:[%s1 + $0x6c] sm:$0xf]
    %v47 = vld [vmem:[%s1 + $0x70] sm:$0xf]
    %v48 = vld [vmem:[%s1 + $0x74] sm:$0xf]
    %v49 = vld [vmem:[%s1 + $0x78] sm:$0xf]
    %v50 = vld [vmem:[%s1 + $0x7c] sm:$0xf]
    %v51 = vld [vmem:[%s1 + $0x80] sm:$0xf]
    %v52 = vld [vmem:[%s1 + $0x84] sm:$0xf]
    %v53 = vld [vmem:[%s1 + $0x88] sm:$0xf]
    %v54 = vld [vmem:[%s1 + $0x8c] sm:$0xf]
    %v55 = vld [vmem:[%s1 + $0x90] sm:$0xf]
    %v56 = vld [vmem:[%s1 + $0x94] sm:$0xf]
    %v57 = vld [vmem:[%s1 + $0x98] sm:$0xf]
    %v58 = vld [vmem:[%s1 + $0x9c] sm:$0xf]
    %v59 = vld [vmem:[%s1 + $0xa0] sm:$0xf]
    %v60 = vld [vmem:[%s1 + $0xa4] sm:$0xf]
    %v61 = vld [vmem:[%s1 + $0xa8] sm:$0xf]
    %v62 = vld [vmem:[%s1 + $0xac] sm:$0xf]
    %v63 = vld [vmem:[%s1 + $0xb0] sm:$0xf]
    %v64 = vld [vmem:[%s1 + $0xb4] sm:$0xf]
    %v65 = vld [vmem:[%s1 + $0xb8] sm:$0xf]
    %v66 = vld [vmem:[%s1 + $0xbc] sm:$0xf]
    %v67 = vld [vmem:[%s1 + $0xc0] sm:$0xf]
    %v68 = vld [vmem:[%s1 + $0xc4] sm:$0xf]
    %v69 = vld [vmem:[%s1 + $0xc8] sm:$0xf]
    %v70 = vld [vmem:[%s1 + $0xcc] sm:$0xf]
    %v71 = vld [vmem:[%s1 + $0xd0] sm:$0xf]
    %v72 = vld [vmem:[%s1 + $0xd4] sm:$0xf]
    %v73 = vld [vmem:[%s1 + $0xd8] sm:$0xf]
    %v74 = vld [vmem:[%s1 + $0xdc] sm:$0xf]
    %v75 = vld [vmem:[%s1 + $0xe0] sm:$0xf]
    %v76 = vld [vmem:[%s1 + $0xe4] sm:$0xf]
    %v77 = vld [vmem:[%s1 + $0xe8] sm:$0xf]
    %v78 = vld [vmem:[%s1 + $0xec] sm:$0xf]
    %v79 = vld [vmem:[%s1 + $0xf0] sm:$0xf]
    %v80 = vld [vmem:[%s1 + $0xf4] sm:$0xf]
    %v81 = vld [vmem:[%s1 + $0xf8] sm:$0xf]
    %v82 = vld [vmem:[%s1 + $0xfc] sm:$0xf]
    %v83 = vld [vmem:[%s1 + $0x100] sm:$0xf]
    %v84 = vld [vmem:[%s1 + $0x104] sm:$0xf]
    %v85 = vld [vmem:[%s1 + $0x108] sm:$0xf]
    %v86 = vld [vmem:[%s1 + $0x10c] sm:$0xf]
    %v87 = vld [vmem:[%s1 + $0x110] sm:$0xf]
    %v88 = vld [vmem:[%s1 + $0x114] sm:$0xf]
    %v89 = vld [vmem:[%s1 + $0x118] sm:$0xf]
    %v90 = vld [vmem:[%s1 + $0x11c] sm:$0xf]
    %v91 = vld [vmem:[%s1 + $0x120] sm:$0xf]
    %v92 = vld [vmem:[%s1 + $0x124] sm:$0xf]
    %v93 = vld [vmem:[%s1 + $0x128] sm:$0xf]
    %v94 = vld [vmem:[%s1 + $0x12c] sm:$0xf]
    %v95 = vld [vmem:[%s1 + $0x130] sm:$0xf]
    %v96 = vld [vmem:[%s1 + $0x134] sm:$0xf]
    %v97 = vld [vmem:[%s1 + $0x138] sm:$0xf]
    %v98 = vld [vmem:[%s1 + $0x13c] sm:$0xf]
    %v99 = vld [vmem:[%s1 + $0x140] sm:$0xf]
    %v100 = vld [vmem:[%s1 + $0x144] sm:$0xf]
    %v101 = vld [vmem:[%s1 + $0x148] sm:$0xf]
    %v102 = vld [vmem:[%s1 + $0x14c] sm:$0xf]
    %v103 = vld [vmem:[%s1 + $0x150] sm:$0xf]
    %v104 = vld [vmem:[%s1 + $0x154] sm:$0xf]
    %v105 = vld [vmem:[%s1 + $0x158] sm:$0xf]
    %v106 = vld [vmem:[%s1 + $0x15c] sm:$0xf]
    %v107 = vld [vmem:[%s1 + $0x160] sm:$0xf]
    %v108 = vld [vmem:[%s1 + $0x164] sm:$0xf]
    %v109 = vld [vmem:[%s1 + $0x168] sm:$0xf]
    %v110 = vld [vmem:[%s1 + $0x16c] sm:$0xf]
    %v111 = vld [vmem:[%s1 + $0x170] sm:$0xf]
    %v112 = vld [vmem:[%s1 + $0x174] sm:$0xf]
    %v113 = vld [vmem:[%s1 + $0x178] sm:$0xf]
    %v114 = vld [vmem:[%s1 + $0x17c] sm:$0xf]
    %v115 = vld [vmem:[%s1 + $0x180] sm:$0xf]
    %v116 = vld [vmem:[%s1 + $0x184] sm:$0xf]
    %v117 = vld [vmem:[%s1 + $0x188] sm:$0xf]
    %v118 = vld [vmem:[%s1 + $0x18c] sm:$0xf]
    %v119 = vld [vmem:[%s1 + $0x190] sm:$0xf]
    %v120 = vld [vmem:[%s1 + $0x194] sm:$0xf]
    %v121 = vld [vmem:[%s1 + $0x198] sm:$0xf]
    %v122 = vld [vmem:[%s1 + $0x19c] sm:$0xf]
    %v123 = vld [vmem:[%s1 + $0x1a0] sm:$0xf]
    %v124 = vld [vmem:[%s1 + $0x1a4] sm:$0xf]
    %v125 = vld [vmem:[%s1 + $0x1a8] sm:$0xf]
    %v126 = vld [vmem:[%s1 + $0x1ac] sm:$0xf]
    %v127 = vld [vmem:[%s1 + $0x1b0] sm:$0xf]
    %v128 = vld [vmem:[%s1 + $0x1b4] sm:$0xf]
    %v129 = vld [vmem:[%s1 + $0x1b8] sm:$0xf]
    %v130 = vld [vmem:[%s1 + $0x1bc] sm:$0xf]
    %v131 = vld [vmem:[%s1 + $0x1c0] sm:$0xf]
    %v132 = vld [vmem:[%s1 + $0x1c4] sm:$0xf]
    %v133 = vld [vmem:[%s1 + $0x1c8] sm:$0xf]
    %v134 = vld [vmem:[%s1 + $0x1cc] sm:$0xf]
    %v135 = vld [vmem:[%s1 + $0x1d0] sm:$0xf]
    %v136 = vld [vmem:[%s1 + $0x1d4] sm:$0xf]
    %v137 = vld [vmem:[%s1 + $0x1d8] sm:$0xf]
    %v138 = vld [vmem:[%s1 + $0x1dc] sm:$0xf]
    %v139 = vld [vmem:[%s1 + $0x1e0] sm:$0xf]
    %v140 = vld [vmem:[%s1 + $0x1e4] sm:$0xf]
    %v141 = vld [vmem:[%s1 + $0x1e8] sm:$0xf]
    %v142 = vld [vmem:[%s1 + $0x1ec] sm:$0xf]
    %v143 = vld [vmem:[%s1 + $0x1f0] sm:$0xf]
    %v144 = vld [vmem:[%s1 + $0x1f4] sm:$0xf]
    %v145 = vld [vmem:[%s1 + $0x1f8] sm:$0xf]
    %v146 = vld [vmem:[%s1 + $0x1fc] sm:$0xf]
    %v147 = vld [vmem:[%s1 + $0x200] sm:$0xf]
    %v148 = vld [vmem:[%s1 + $0x204] sm:$0xf]
    %v149 = vld [vmem:[%s1 + $0x208] sm:$0xf]
    %v150 = vld [vmem:[%s1 + $0x20c] sm:$0xf]
    %v151 = vld [vmem:[%s1 + $0x210] sm:$0xf]
    %v152 = vld [vmem:[%s1 + $0x214] sm:$0xf]
    %v153 = vld [vmem:[%s1 + $0x218] sm:$0xf]
    %v154 = vld [vmem:[%s1 + $0x21c] sm:$0xf]
    %v155 = vld [vmem:[%s1 + $0x220] sm:$0xf]
    %v156 = vld [vmem:[%s1 + $0x224] sm:$0xf]
    %v157 = vld [vmem:[%s1 + $0x228] sm:$0xf]
    %v158 = vld [vmem:[%s1 + $0x22c] sm:$0xf]
    %v159 = vld [vmem:[%s1 + $0x230] sm:$0xf]
    %v160 = vld [vmem:[%s1 + $0x234] sm:$0xf]
    %v161 = vld [vmem:[%s1 + $0x238] sm:$0xf]
    %v162 = vld [vmem:[%s1 + $0x23c] sm:$0xf]
    %v163 = vld [vmem:[%s1 + $0x240] sm:$0xf]
    %v164 = vld [vmem:[%s1 + $0x244] sm:$0xf]
    %v165 = vld [vmem:[%s1 + $0x248] sm:$0xf]
    %v166 = vld [vmem:[%s1 + $0x24c] sm:$0xf]
    %v167 = vld [vmem:[%s1 + $0x250] sm:$0xf]
    %v168 = vld [vmem:[%s1 + $0x254] sm:$0xf]
    %v169 = vld [vmem:[%s1 + $0x258] sm:$0xf]
    %v170 = vld [vmem:[%s1 + $0x25c] sm:$0xf]
    %v171 = vld [vmem:[%s1 + $0x260] sm:$0xf]
    %v172 = vld [vmem:[%s1 + $0x264] sm:$0xf]
    %v173 = vld [vmem:[%s1 + $0x268] sm:$0xf]
    %v174 = vld [vmem:[%s1 + $0x26c] sm:$0xf]
    %v175 = vld [vmem:[%s1 + $0x270] sm:$0xf]
    %v176 = vld [vmem:[%s1 + $0x274] sm:$0xf]
    %v177 = vld [vmem:[%s1 + $0x278] sm:$0xf]
    %v178 = vld [vmem:[%s1 + $0x27c] sm:$0xf]
    %v179 = vld [vmem:[%s1 + $0x280] sm:$0xf]
    %v180 = vld [vmem:[%s1 + $0x284] sm:$0xf]
    %v181 = vld [vmem:[%s1 + $0x288] sm:$0xf]
    %v182 = vld [vmem:[%s1 + $0x28c] sm:$0xf]
    %v183 = vld [vmem:[%s1 + $0x290] sm:$0xf]
    %v184 = vld [vmem:[%s1 + $0x294] sm:$0xf]
    %v185 = vld [vmem:[%s1 + $0x298] sm:$0xf]
    %v186 = vld [vmem:[%s1 + $0x29c] sm:$0xf]
    %v187 = vld [vmem:[%s1 + $0x2a0] sm:$0xf]
    %v188 = vld [vmem:[%s1 + $0x2a4] sm:$0xf]
    %v189 = vld [vmem:[%s1 + $0x2a8] sm:$0xf]
    %v190 = vld [vmem:[%s1 + $0x2ac] sm:$0xf]
    %v191 = vld [vmem:[%s1 + $0x2b0] sm:$0xf]
    %v192 = vld [vmem:[%s1 + $0x2b4] sm:$0xf]
    %v193 = vld [vmem:[%s1 + $0x2b8] sm:$0xf]
    %v194 = vld [vmem:[%s1 + $0x2bc] sm:$0xf]
    %v195 = vld [vmem:[%s1 + $0x2c0] sm:$0xf]
    %v196 = vld [vmem:[%s1 + $0x2c4] sm:$0xf]
    %v197 = vld [vmem:[%s1 + $0x2c8] sm:$0xf]
    %v198 = vld [vmem:[%s1 + $0x2cc] sm:$0xf]
    %v199 = vld [vmem:[%s1 + $0x2d0] sm:$0xf]
    %v200 = vld [vmem:[%s1 + $0x2d4] sm:$0xf]
    %v201 = vld [vmem:[%s1 + $0x2d8] sm:$0xf]
    %v202 = vld [vmem:[%s1 + $0x2dc] sm:$0xf]
    %v203 = vld [vmem:[%s1 + $0x2e0] sm:$0xf]
    %v204 = vld [vmem:[%s1 + $0x2e4] sm:$0xf]
    %v205 = vld [vmem:[%s1 + $0x2e8] sm:$0xf]
    %v206 = vld [vmem:[%s1 + $0x2ec] sm:$0xf]
    %v207 = vld [vmem:[%s1 + $0x2f0] sm:$0xf]
    %v208 = vld [vmem:[%s1 + $0x2f4] sm:$0xf]
    %v209 = vld [vmem:[%s1 + $0x2f8] sm:$0xf]
    %v210 = vld [vmem:[%s1 + $0x2fc] sm:$0xf]
    %v211 = vld [vmem:[%s1 + $0x300] sm:$0xf]
    %v212 = vld [vmem:[%s1 + $0x304] sm:$0xf]
    %v213 = vld [vmem:[%s1 + $0x308] sm:$0xf]
    %v214 = vld [vmem:[%s1 + $0x30c] sm:$0xf]
    %v215 = vld [vmem:[%s1 + $0x310] sm:$0xf]
    %v216 = vld [vmem:[%s1 + $0x314] sm:$0xf]
    %v217 = vld [vmem:[%s1 + $0x318] sm:$0xf]
    %v218 = vld [vmem:[%s1 + $0x31c] sm:$0xf]
    %v219 = vld [vmem:[%s1 + $0x320] sm:$0xf]
    %v220 = vld [vmem:[%s1 + $0x324] sm:$0xf]
    %v221 = vld [vmem:[%s1 + $0x328] sm:$0xf]
    %v222 = vld [vmem:[%s1 + $0x32c] sm:$0xf]
    %v223 = vld [vmem:[%s1 + $0x330] sm:$0xf]
    %v224 = vld [vmem:[%s1 + $0x334] sm:$0xf]
    %v225 = vld [vmem:[%s1 + $0x338] sm:$0xf]
    %v226 = vld [vmem:[%s1 + $0x33c] sm:$0xf]
    %v227 = vld [vmem:[%s1 + $0x340] sm:$0xf]
    %v228 = vld [vmem:[%s1 + $0x344] sm:$0xf]
    %v229 = vld [vmem:[%s1 + $0x348] sm:$0xf]
    %v230 = vld [vmem:[%s1 + $0x34c] sm:$0xf]
    %v231 = vld [vmem:[%s1 + $0x350] sm:$0xf]
    %v232 = vld [vmem:[%s1 + $0x354] sm:$0xf]
    %v233 = vld [vmem:[%s1 + $0x358] sm:$0xf]
    %v234 = vld [vmem:[%s1 + $0x35c] sm:$0xf]
    %v235 = vld [vmem:[%s1 + $0x360] sm:$0xf]
    %v236 = vld [vmem:[%s1 + $0x364] sm:$0xf]
    %v237 = vld [vmem:[%s1 + $0x368] sm:$0xf]
    %v238 = vld [vmem:[%s1 + $0x36c] sm:$0xf]
    %v239 = vld [vmem:[%s1 + $0x370] sm:$0xf]
    %v240 = vld [vmem:[%s1 + $0x374] sm:$0xf]
    %v241 = vld [vmem:[%s1 + $0x378] sm:$0xf]
    %v242 = vld [vmem:[%s1 + $0x37c] sm:$0xf]
    %v243 = vld [vmem:[%s1 + $0x380] sm:$0xf]
    %v244 = vld [vmem:[%s1 + $0x384] sm:$0xf]
    %v245 = vld [vmem:[%s1 + $0x388] sm:$0xf]
    %v246 = vld [vmem:[%s1 + $0x38c] sm:$0xf]
    %v247 = vld [vmem:[%s1 + $0x390] sm:$0xf]
    %v248 = vld [vmem:[%s1 + $0x394] sm:$0xf]
    %v249 = vld [vmem:[%s1 + $0x398] sm:$0xf]
    %v250 = vld [vmem:[%s1 + $0x39c] sm:$0xf]
    %v251 = vld [vmem:[%s1 + $0x3a0] sm:$0xf]
    %v252 = vld [vmem:[%s1 + $0x3a4] sm:$0xf]
    %v253 = vld [vmem:[%s1 + $0x3a8] sm:$0xf]
    %v254 = vld [vmem:[%s1 + $0x3ac] sm:$0xf]
    %v255 = vld [vmem:[%s1 + $0x3b0] sm:$0xf]
    %v256 = vld [vmem:[%s1 + $0x3b4] sm:$0xf]
    %v257 = vld [vmem:[%s1 + $0x3b8] sm:$0xf]
    %v258 = vld [vmem:[%s1 + $0x3bc] sm:$0xf]
    %v259 = vld [vmem:[%s1 + $0x3c0] sm:$0xf]
    %v260 = vld [vmem:[%s1 + $0x3c4] sm:$0xf]
    %v261 = vld [vmem:[%s1 + $0x3c8] sm:$0xf]
    %v262 = vld [vmem:[%s1 + $0x3cc] sm:$0xf]
    %v263 = vld [vmem:[%s1 + $0x3d0] sm:$0xf]
    %v264 = vld [vmem:[%s1 + $0x3d4] sm:$0xf]
    %v265 = vld [vmem:[%s1 + $0x3d8] sm:$0xf]
    %v266 = vld [vmem:[%s1 + $0x3dc] sm:$0xf]
    %v267 = vld [vmem:[%s1 + $0x3e0] sm:$0xf]
    %v268 = vld [vmem:[%s1 + $0x3e4] sm:$0xf]
    %v269 = vld [vmem:[%s1 + $0x3e8] sm:$0xf]
    %v270 = vld [vmem:[%s1 + $0x3ec] sm:$0xf]
    %v271 = vld [vmem:[%s1 + $0x3f0] sm:$0xf]
    %v272 = vld [vmem:[%s1 + $0x3f4] sm:$0xf]
    %v273 = vld [vmem:[%s1 + $0x3f8] sm:$0xf]
    %v274 = vld [vmem:[%s1 + $0x3fc] sm:$0xf]
    %v275 = vld [vmem:[%s1 + $0x400] sm:$0xf]
    %v276 = vld [vmem:[%s1 + $0x404] sm:$0xf]
    %v277 = vld [vmem:[%s1 + $0x408] sm:$0xf]
    %v278 = vld [vmem:[%s1 + $0x40c] sm:$0xf]
    %v279 = vld [vmem:[%s1 + $0x410] sm:$0xf]
    %v280 = vld [vmem:[%s1 + $0x414] sm:$0xf]
    %v281 = vld [vmem:[%s1 + $0x418] sm:$0xf]
    %v282 = vld [vmem:[%s1 + $0x41c] sm:$0xf]
    %v283 = vld [vmem:[%s1 + $0x420] sm:$0xf]
    %v284 = vld [vmem:[%s1 + $0x424] sm:$0xf]
    %v285 = vld [vmem:[%s1 + $0x428] sm:$0xf]
    %v286 = vld [vmem:[%s1 + $0x42c] sm:$0xf]
    %v287 = vld [vmem:[%s1 + $0x430] sm:$0xf]
    %v288 = vld [vmem:[%s1 + $0x434] sm:$0xf]
    %v289 = vld [vmem:[%s1 + $0x438] sm:$0xf]
    %v290 = vld [vmem:[%s1 + $0x43c] sm:$0xf]
    %v291 = vld [vmem:[%s1 + $0x440] sm:$0xf]
    %v292 = vld [vmem:[%s1 + $0x444] sm:$0xf]
    %v293 = vld [vmem:[%s1 + $0x448] sm:$0xf]
    %v294 = vld [vmem:[%s1 + $0x44c] sm:$0xf]
    %v295 = vld [vmem:[%s1 + $0x450] sm:$0xf]
    %v296 = vld [vmem:[%s1 + $0x454] sm:$0xf]
    %v297 = vld [vmem:[%s1 + $0x458] sm:$0xf]
    %v298 = vld [vmem:[%s1 + $0x45c] sm:$0xf]
    %v299 = vld [vmem:[%s1 + $0x460] sm:$0xf]
    %v300 = vld [vmem:[%s1 + $0x464] sm:$0xf]
    %v301 = vld [vmem:[%s1 + $0x468] sm:$0xf]
    %v302 = vld [vmem:[%s1 + $0x46c] sm:$0xf]
    %v303 = vld [vmem:[%s1 + $0x470] sm:$0xf]
    %v304 = vld [vmem:[%s1 + $0x474] sm:$0xf]
    %v305 = vld [vmem:[%s1 + $0x478] sm:$0xf]
    %v306 = vld [vmem:[%s1 + $0x47c] sm:$0xf]
    %v307 = vld [vmem:[%s1 + $0x480] sm:$0xf]
    %v308 = vld [vmem:[%s1 + $0x484] sm:$0xf]
    %v309 = vld [vmem:[%s1 + $0x488] sm:$0xf]
    %v310 = vld [vmem:[%s1 + $0x48c] sm:$0xf]
    %v311 = vld [vmem:[%s1 + $0x490] sm:$0xf]
    %v312 = vld [vmem:[%s1 + $0x494] sm:$0xf]
    %v313 = vld [vmem:[%s1 + $0x498] sm:$0xf]
    %v314 = vld [vmem:[%s1 + $0x49c] sm:$0xf]
    %v315 = vld [vmem:[%s1 + $0x4a0] sm:$0xf]
    %v316 = vld [vmem:[%s1 + $0x4a4] sm:$0xf]
    %v317 = vld [vmem:[%s1 + $0x4a8] sm:$0xf]
    %v318 = vld [vmem:[%s1 + $0x4ac] sm:$0xf]
    %v319 = vld [vmem:[%s1 + $0x4b0] sm:$0xf]
    %v320 = vld [vmem:[%s1 + $0x4b4] sm:$0xf]
    %v321 = vld [vmem:[%s1 + $0x4b8] sm:$0xf]
    %v322 = vld [vmem:[%s1 + $0x4bc] sm:$0xf]
    %v323 = vld [vmem:[%s1 + $0x4c0] sm:$0xf]
    %v324 = vld [vmem:[%s1 + $0x4c4] sm:$0xf]
    %v325 = vld [vmem:[%s1 + $0x4c8] sm:$0xf]
    %v326 = vld [vmem:[%s1 + $0x4cc] sm:$0xf]
    %v327 = vld [vmem:[%s1 + $0x4d0] sm:$0xf]
    %v328 = vld [vmem:[%s1 + $0x4d4] sm:$0xf]
    %v329 = vld [vmem:[%s1 + $0x4d8] sm:$0xf]
    %v330 = vld [vmem:[%s1 + $0x4dc] sm:$0xf]
    %v331 = vld [vmem:[%s1 + $0x4e0] sm:$0xf]
    %v332 = vld [vmem:[%s1 + $0x4e4] sm:$0xf]
    %v333 = vld [vmem:[%s1 + $0x4e8] sm:$0xf]
    %v334 = vld [vmem:[%s1 + $0x4ec] sm:$0xf]
    %v335 = vld [vmem:[%s1 + $0x4f0] sm:$0xf]
    %v336 = vld [vmem:[%s1 + $0x4f4] sm:$0xf]
    %v337 = vld [vmem:[%s1 + $0x4f8] sm:$0xf]
    %v338 = vld [vmem:[%s1 + $0x4fc] sm:$0xf]
    %v339 = vld [vmem:[%s1 + $0x500] sm:$0xf]
    %v340 = vld [vmem:[%s1 + $0x504] sm:$0xf]
    %v341 = vld [vmem:[%s1 + $0x508] sm:$0xf]
    %v342 = vld [vmem:[%s1 + $0x50c] sm:$0xf]
    %v343 = vld [vmem:[%s1 + $0x510] sm:$0xf]
    %v344 = vld [vmem:[%s1 + $0x514] sm:$0xf]
    %v345 = vld [vmem:[%s1 + $0x518] sm:$0xf]
    %v346 = vld [vmem:[%s1 + $0x51c] sm:$0xf]
    %v347 = vld [vmem:[%s1 + $0x520] sm:$0xf]
    %v348 = vld [vmem:[%s1 + $0x524] sm:$0xf]
    %v349 = vld [vmem:[%s1 + $0x528] sm:$0xf]
    %v350 = vld [vmem:[%s1 + $0x52c] sm:$0xf]
    %v351 = vld [vmem:[%s1 + $0x530] sm:$0xf]
    %v352 = vld [vmem:[%s1 + $0x534] sm:$0xf]
    %v353 = vld [vmem:[%s1 + $0x538] sm:$0xf]
    %v354 = vld [vmem:[%s1 + $0x53c] sm:$0xf]
    %v355 = vld [vmem:[%s1 + $0x540] sm:$0xf]
    %v356 = vld [vmem:[%s1 + $0x544] sm:$0xf]
    %v357 = vld [vmem:[%s1 + $0x548] sm:$0xf]
    %v358 = vld [vmem:[%s1 + $0x54c] sm:$0xf]
    %v359 = vld [vmem:[%s1 + $0x550] sm:$0xf]
    %v360 = vld [vmem:[%s1 + $0x554] sm:$0xf]
    %v361 = vld [vmem:[%s1 + $0x558] sm:$0xf]
    %v362 = vld [vmem:[%s1 + $0x55c] sm:$0xf]
    %v363 = vld [vmem:[%s1 + $0x560] sm:$0xf]
    %v364 = vld [vmem:[%s1 + $0x564] sm:$0xf]
    %v365 = vld [vmem:[%s1 + $0x568] sm:$0xf]
    %v366 = vld [vmem:[%s1 + $0x56c] sm:$0xf]
    %v367 = vld [vmem:[%s1 + $0x570] sm:$0xf]
    %v368 = vld [vmem:[%s1 + $0x574] sm:$0xf]
    %v369 = vld [vmem:[%s1 + $0x578] sm:$0xf]
    %v370 = vld [vmem:[%s1 + $0x57c] sm:$0xf]
    %v371 = vld [vmem:[%s1 + $0x580] sm:$0xf]
    %v372 = vld [vmem:[%s1 + $0x584] sm:$0xf]
    %v373 = vld [vmem:[%s1 + $0x588] sm:$0xf]
    %v374 = vld [vmem:[%s1 + $0x58c] sm:$0xf]
    %v375 = vld [vmem:[%s1 + $0x590] sm:$0xf]
    %v376 = vld [vmem:[%s1 + $0x594] sm:$0xf]
    %v377 = vld [vmem:[%s1 + $0x598] sm:$0xf]
    %v378 = vld [vmem:[%s1 + $0x59c] sm:$0xf]
    %v379 = vld [vmem:[%s1 + $0x5a0] sm:$0xf]
    %v380 = vld [vmem:[%s1 + $0x5a4] sm:$0xf]
    %v381 = vld [vmem:[%s1 + $0x5a8] sm:$0xf]
    %v382 = vld [vmem:[%s1 + $0x5ac] sm:$0xf]
    %v383 = vld [vmem:[%s1 + $0x5b0] sm:$0xf]
    %v384 = vld [vmem:[%s1 + $0x5b4] sm:$0xf]
    %v385 = vld [vmem:[%s1 + $0x5b8] sm:$0xf]
    %v386 = vld [vmem:[%s1 + $0x5bc] sm:$0xf]
    %v387 = vld [vmem:[%s1 + $0x5c0] sm:$0xf]
    %v388 = vld [vmem:[%s1 + $0x5c4] sm:$0xf]
    %v389 = vld [vmem:[%s1 + $0x5c8] sm:$0xf]
    %v390 = vld [vmem:[%s1 + $0x5cc] sm:$0xf]
    %v391 = vld [vmem:[%s1 + $0x5d0] sm:$0xf]
    %v392 = vld [vmem:[%s1 + $0x5d4] sm:$0xf]
    %v393 = vld [vmem:[%s1 + $0x5d8] sm:$0xf]
    %v394 = vld [vmem:[%s1 + $0x5dc] sm:$0xf]
    %v395 = vld [vmem:[%s1 + $0x5e0] sm:$0xf]
    %v396 = vld [vmem:[%s1 + $0x5e4] sm:$0xf]
    %v397 = vld [vmem:[%s1 + $0x5e8] sm:$0xf]
    %v398 = vld [vmem:[%s1 + $0x5ec] sm:$0xf]
    %v399 = vld [vmem:[%s1 + $0x5f0] sm:$0xf]
    %v400 = vld [vmem:[%s1 + $0x5f4] sm:$0xf]
    %v401 = vld [vmem:[%s1 + $0x5f8] sm:$0xf]
    %v402 = vld [vmem:[%s1 + $0x5fc] sm:$0xf]
    %v403 = vld [vmem:[%s2] sm:$0x1]
    %v405 = vlaneseq
    %v406 = vshrl.u32 %v405, 7
    %v407 = vsub.s32 0, %v406
    %v408 = vrot.slane %v403, %v407
    %v413 = vcombine.high %v16, %v16
    %v415 = vunpack.c.l.s4 1966171168
    %v416 = vunpack.c.0.s8 %v415
    %v417 = vlaneseq
    %v418 = vshrl.u32 %v417, 7
    %v419 = vsub.s32 %v416, %v418
    %v420 = vrot.slane %v16, %v419
    %v422 = vunpack.c.l.s4 1966171168
    %v423 = vunpack.c.0.s8 %v422
    %v424 = vlaneseq
    %v425 = vshrl.u32 %v424, 7
    %v426 = vsub.s32 %v423, %v425
    %v427 = vrot.slane %v413, %v426
    %v428 = vcombine.high %v420, %v420
    %v429 = vcombine.high %v427, %v427
    %v431 = vunpack.c.l.s4 1966171168
    %v432 = vunpack.c.0.s8 %v431
    %v433 = vlaneseq
    %v434 = vshrl.u32 %v433, 7
    %v435 = vsub.s32 %v432, %v434
    %v436 = vrot.slane %v420, %v435
    %v438 = vunpack.c.l.s4 1966171168
    %v439 = vunpack.c.0.s8 %v438
    %v440 = vlaneseq
    %v441 = vshrl.u32 %v440, 7
    %v442 = vsub.s32 %v439, %v441
    %v443 = vrot.slane %v427, %v442
    %v445 = vunpack.c.l.s4 1966171168
    %v446 = vunpack.c.0.s8 %v445
    %v447 = vlaneseq
    %v448 = vshrl.u32 %v447, 7
    %v449 = vsub.s32 %v446, %v448
    %v450 = vrot.slane %v428, %v449
    %v452 = vunpack.c.l.s4 1966171168
    %v453 = vunpack.c.0.s8 %v452
    %v454 = vlaneseq
    %v455 = vshrl.u32 %v454, 7
    %v456 = vsub.s32 %v453, %v455
    %v457 = vrot.slane %v429, %v456
    %v458 = vcombine.high %v436, %v436
    %v459 = vcombine.high %v443, %v443
    %v460 = vcombine.high %v450, %v450
    %v461 = vcombine.high %v457, %v457
    %v462 = vcombine.high %v17, %v17
    %v464 = vunpack.c.l.s4 1966171168
    %v465 = vunpack.c.0.s8 %v464
    %v466 = vlaneseq
    %v467 = vshrl.u32 %v466, 7
    %v468 = vsub.s32 %v465, %v467
    %v469 = vrot.slane %v17, %v468
    %v471 = vunpack.c.l.s4 1966171168
    %v472 = vunpack.c.0.s8 %v471
    %v473 = vlaneseq
    %v474 = vshrl.u32 %v473, 7
    %v475 = vsub.s32 %v472, %v474
    %v476 = vrot.slane %v462, %v475
    %v477 = vcombine.high %v469, %v469
    %v478 = vcombine.high %v476, %v476
    %v480 = vunpack.c.l.s4 1966171168
    %v481 = vunpack.c.0.s8 %v480
    %v482 = vlaneseq
    %v483 = vshrl.u32 %v482, 7
    %v484 = vsub.s32 %v481, %v483
    %v485 = vrot.slane %v469, %v484
    %v487 = vunpack.c.l.s4 1966171168
    %v488 = vunpack.c.0.s8 %v487
    %v489 = vlaneseq
    %v490 = vshrl.u32 %v489, 7
    %v491 = vsub.s32 %v488, %v490
    %v492 = vrot.slane %v476, %v491
    %v494 = vunpack.c.l.s4 1966171168
    %v495 = vunpack.c.0.s8 %v494
    %v496 = vlaneseq
    %v497 = vshrl.u32 %v496, 7
    %v498 = vsub.s32 %v495, %v497
    %v499 = vrot.slane %v477, %v498
    %v501 = vunpack.c.l.s4 1966171168
    %v502 = vunpack.c.0.s8 %v501
    %v503 = vlaneseq
    %v504 = vshrl.u32 %v503, 7
    %v505 = vsub.s32 %v502, %v504
    %v506 = vrot.slane %v478, %v505
    %v507 = vcombine.high %v485, %v485
    %v508 = vcombine.high %v492, %v492
    %v509 = vcombine.high %v499, %v499
    %v510 = vcombine.high %v506, %v506
    %v511 = vcombine.high %v18, %v18
    %v513 = vunpack.c.l.s4 1966171168
    %v514 = vunpack.c.0.s8 %v513
    %v515 = vlaneseq
    %v516 = vshrl.u32 %v515, 7
    %v517 = vsub.s32 %v514, %v516
    %v518 = vrot.slane %v18, %v517
    %v520 = vunpack.c.l.s4 1966171168
    %v521 = vunpack.c.0.s8 %v520
    %v522 = vlaneseq
    %v523 = vshrl.u32 %v522, 7
    %v524 = vsub.s32 %v521, %v523
    %v525 = vrot.slane %v511, %v524
    %v526 = vcombine.high %v518, %v518
    %v527 = vcombine.high %v525, %v525
    %v529 = vunpack.c.l.s4 1966171168
    %v530 = vunpack.c.0.s8 %v529
    %v531 = vlaneseq
    %v532 = vshrl.u32 %v531, 7
    %v533 = vsub.s32 %v530, %v532
    %v534 = vrot.slane %v518, %v533
    %v536 = vunpack.c.l.s4 1966171168
    %v537 = vunpack.c.0.s8 %v536
    %v538 = vlaneseq
    %v539 = vshrl.u32 %v538, 7
    %v540 = vsub.s32 %v537, %v539
    %v541 = vrot.slane %v525, %v540
    %v543 = vunpack.c.l.s4 1966171168
    %v544 = vunpack.c.0.s8 %v543
    %v545 = vlaneseq
    %v546 = vshrl.u32 %v545, 7
    %v547 = vsub.s32 %v544, %v546
    %v548 = vrot.slane %v526, %v547
    %v550 = vunpack.c.l.s4 1966171168
    %v551 = vunpack.c.0.s8 %v550
    %v552 = vlaneseq
    %v553 = vshrl.u32 %v552, 7
    %v554 = vsub.s32 %v551, %v553
    %v555 = vrot.slane %v527, %v554
    %v556 = vcombine.high %v534, %v534
    %v557 = vcombine.high %v541, %v541
    %v558 = vcombine.high %v548, %v548
    %v559 = vcombine.high %v555, %v555
    %v968 = vunpack.c.l.b16 %v19
    %v969 = vunpack.c.l.b16 %v20
    %v970 = vunpack.c.l.b16 %v21
    %v971 = vunpack.c.l.b16 %v22
    %v972 = vunpack.c.l.b16 %v23
    %v973 = vunpack.c.l.b16 %v24
    %v974 = vunpack.c.l.b16 %v25
    %v975 = vunpack.c.l.b16 %v26
    %v976 = vunpack.c.l.b16 %v27
    %v977 = vunpack.c.l.b16 %v28
    %v978 = vunpack.c.l.b16 %v29
    %v979 = vunpack.c.l.b16 %v30
    %v980 = vunpack.c.l.b16 %v31
    %v981 = vunpack.c.l.b16 %v32
    %v982 = vunpack.c.l.b16 %v33
    %v983 = vunpack.c.l.b16 %v34
    %v984 = vunpack.c.l.b16 %v35
    %v985 = vunpack.c.l.b16 %v36
    %v986 = vunpack.c.l.b16 %v37
    %v987 = vunpack.c.l.b16 %v38
    %v988 = vunpack.c.l.b16 %v39
    %v989 = vunpack.c.l.b16 %v40
    %v990 = vunpack.c.l.b16 %v41
    %v991 = vunpack.c.l.b16 %v42
    %v992 = vunpack.c.l.b16 %v43
    %v993 = vunpack.c.l.b16 %v44
    %v994 = vunpack.c.l.b16 %v45
    %v995 = vunpack.c.l.b16 %v46
    %v996 = vunpack.c.l.b16 %v47
    %v997 = vunpack.c.l.b16 %v48
    %v998 = vunpack.c.l.b16 %v49
    %v999 = vunpack.c.l.b16 %v50
    %v1000 = vunpack.c.l.b16 %v51
    %v1001 = vunpack.c.l.b16 %v52
    %v1002 = vunpack.c.l.b16 %v53
    %v1003 = vunpack.c.l.b16 %v54
    %v1004 = vunpack.c.l.b16 %v55
    %v1005 = vunpack.c.l.b16 %v56
    %v1006 = vunpack.c.l.b16 %v57
    %v1007 = vunpack.c.l.b16 %v58
    %v1008 = vunpack.c.l.b16 %v59
    %v1009 = vunpack.c.l.b16 %v60
    %v1010 = vunpack.c.l.b16 %v61
    %v1011 = vunpack.c.l.b16 %v62
    %v1012 = vunpack.c.l.b16 %v63
    %v1013 = vunpack.c.l.b16 %v64
    %v1014 = vunpack.c.l.b16 %v65
    %v1015 = vunpack.c.l.b16 %v66
    %v1016 = vunpack.c.l.b16 %v67
    %v1017 = vunpack.c.l.b16 %v68
    %v1018 = vunpack.c.l.b16 %v69
    %v1019 = vunpack.c.l.b16 %v70
    %v1020 = vunpack.c.l.b16 %v71
    %v1021 = vunpack.c.l.b16 %v72
    %v1022 = vunpack.c.l.b16 %v73
    %v1023 = vunpack.c.l.b16 %v74
    %v1024 = vunpack.c.l.b16 %v75
    %v1025 = vunpack.c.l.b16 %v76
    %v1026 = vunpack.c.l.b16 %v77
    %v1027 = vunpack.c.l.b16 %v78
    %v1028 = vunpack.c.l.b16 %v79
    %v1029 = vunpack.c.l.b16 %v80
    %v1030 = vunpack.c.l.b16 %v81
    %v1031 = vunpack.c.l.b16 %v82
    %v1032 = vunpack.c.l.b16 %v83
    %v1033 = vunpack.c.l.b16 %v84
    %v1034 = vunpack.c.l.b16 %v85
    %v1035 = vunpack.c.l.b16 %v86
    %v1036 = vunpack.c.l.b16 %v87
    %v1037 = vunpack.c.l.b16 %v88
    %v1038 = vunpack.c.l.b16 %v89
    %v1039 = vunpack.c.l.b16 %v90
    %v1040 = vunpack.c.l.b16 %v91
    %v1041 = vunpack.c.l.b16 %v92
    %v1042 = vunpack.c.l.b16 %v93
    %v1043 = vunpack.c.l.b16 %v94
    %v1044 = vunpack.c.l.b16 %v95
    %v1045 = vunpack.c.l.b16 %v96
    %v1046 = vunpack.c.l.b16 %v97
    %v1047 = vunpack.c.l.b16 %v98
    %v1048 = vunpack.c.l.b16 %v99
    %v1049 = vunpack.c.l.b16 %v100
    %v1050 = vunpack.c.l.b16 %v101
    %v1051 = vunpack.c.l.b16 %v102
    %v1052 = vunpack.c.l.b16 %v103
    %v1053 = vunpack.c.l.b16 %v104
    %v1054 = vunpack.c.l.b16 %v105
    %v1055 = vunpack.c.l.b16 %v106
    %v1056 = vunpack.c.l.b16 %v107
    %v1057 = vunpack.c.l.b16 %v108
    %v1058 = vunpack.c.l.b16 %v109
    %v1059 = vunpack.c.l.b16 %v110
    %v1060 = vunpack.c.l.b16 %v111
    %v1061 = vunpack.c.l.b16 %v112
    %v1062 = vunpack.c.l.b16 %v113
    %v1063 = vunpack.c.l.b16 %v114
    %v1064 = vunpack.c.l.b16 %v115
    %v1065 = vunpack.c.l.b16 %v116
    %v1066 = vunpack.c.l.b16 %v117
    %v1067 = vunpack.c.l.b16 %v118
    %v1068 = vunpack.c.l.b16 %v119
    %v1069 = vunpack.c.l.b16 %v120
    %v1070 = vunpack.c.l.b16 %v121
    %v1071 = vunpack.c.l.b16 %v122
    %v1072 = vunpack.c.l.b16 %v123
    %v1073 = vunpack.c.l.b16 %v124
    %v1074 = vunpack.c.l.b16 %v125
    %v1075 = vunpack.c.l.b16 %v126
    %v1076 = vunpack.c.l.b16 %v127
    %v1077 = vunpack.c.l.b16 %v128
    %v1078 = vunpack.c.l.b16 %v129
    %v1079 = vunpack.c.l.b16 %v130
    %v1080 = vunpack.c.l.b16 %v131
    %v1081 = vunpack.c.l.b16 %v132
    %v1082 = vunpack.c.l.b16 %v133
    %v1083 = vunpack.c.l.b16 %v134
    %v1084 = vunpack.c.l.b16 %v135
    %v1085 = vunpack.c.l.b16 %v136
    %v1086 = vunpack.c.l.b16 %v137
    %v1087 = vunpack.c.l.b16 %v138
    %v1088 = vunpack.c.l.b16 %v139
    %v1089 = vunpack.c.l.b16 %v140
    %v1090 = vunpack.c.l.b16 %v141
    %v1091 = vunpack.c.l.b16 %v142
    %v1092 = vunpack.c.l.b16 %v143
    %v1093 = vunpack.c.l.b16 %v144
    %v1094 = vunpack.c.l.b16 %v145
    %v1095 = vunpack.c.l.b16 %v146
    %v1096 = vunpack.c.l.b16 %v147
    %v1097 = vunpack.c.l.b16 %v148
    %v1098 = vunpack.c.l.b16 %v149
    %v1099 = vunpack.c.l.b16 %v150
    %v1100 = vunpack.c.l.b16 %v151
    %v1101 = vunpack.c.l.b16 %v152
    %v1102 = vunpack.c.l.b16 %v153
    %v1103 = vunpack.c.l.b16 %v154
    %v1104 = vunpack.c.l.b16 %v155
    %v1105 = vunpack.c.l.b16 %v156
    %v1106 = vunpack.c.l.b16 %v157
    %v1107 = vunpack.c.l.b16 %v158
    %v1108 = vunpack.c.l.b16 %v159
    %v1109 = vunpack.c.l.b16 %v160
    %v1110 = vunpack.c.l.b16 %v161
    %v1111 = vunpack.c.l.b16 %v162
    %v1112 = vunpack.c.l.b16 %v163
    %v1113 = vunpack.c.l.b16 %v164
    %v1114 = vunpack.c.l.b16 %v165
    %v1115 = vunpack.c.l.b16 %v166
    %v1116 = vunpack.c.l.b16 %v167
    %v1117 = vunpack.c.l.b16 %v168
    %v1118 = vunpack.c.l.b16 %v169
    %v1119 = vunpack.c.l.b16 %v170
    %v1120 = vunpack.c.l.b16 %v171
    %v1121 = vunpack.c.l.b16 %v172
    %v1122 = vunpack.c.l.b16 %v173
    %v1123 = vunpack.c.l.b16 %v174
    %v1124 = vunpack.c.l.b16 %v175
    %v1125 = vunpack.c.l.b16 %v176
    %v1126 = vunpack.c.l.b16 %v177
    %v1127 = vunpack.c.l.b16 %v178
    %v1128 = vunpack.c.l.b16 %v179
    %v1129 = vunpack.c.l.b16 %v180
    %v1130 = vunpack.c.l.b16 %v181
    %v1131 = vunpack.c.l.b16 %v182
    %v1132 = vunpack.c.l.b16 %v183
    %v1133 = vunpack.c.l.b16 %v184
    %v1134 = vunpack.c.l.b16 %v185
    %v1135 = vunpack.c.l.b16 %v186
    %v1136 = vunpack.c.l.b16 %v187
    %v1137 = vunpack.c.l.b16 %v188
    %v1138 = vunpack.c.l.b16 %v189
    %v1139 = vunpack.c.l.b16 %v190
    %v1140 = vunpack.c.l.b16 %v191
    %v1141 = vunpack.c.l.b16 %v192
    %v1142 = vunpack.c.l.b16 %v193
    %v1143 = vunpack.c.l.b16 %v194
    %v1144 = vunpack.c.l.b16 %v195
    %v1145 = vunpack.c.l.b16 %v196
    %v1146 = vunpack.c.l.b16 %v197
    %v1147 = vunpack.c.l.b16 %v198
    %v1148 = vunpack.c.l.b16 %v199
    %v1149 = vunpack.c.l.b16 %v200
    %v1150 = vunpack.c.l.b16 %v201
    %v1151 = vunpack.c.l.b16 %v202
    %v1152 = vunpack.c.l.b16 %v203
    %v1153 = vunpack.c.l.b16 %v204
    %v1154 = vunpack.c.l.b16 %v205
    %v1155 = vunpack.c.l.b16 %v206
    %v1156 = vunpack.c.l.b16 %v207
    %v1157 = vunpack.c.l.b16 %v208
    %v1158 = vunpack.c.l.b16 %v209
    %v1159 = vunpack.c.l.b16 %v210
    %v1160 = vunpack.c.l.b16 %v211
    %v1161 = vunpack.c.l.b16 %v212
    %v1162 = vunpack.c.l.b16 %v213
    %v1163 = vunpack.c.l.b16 %v214
    %v1164 = vunpack.c.l.b16 %v215
    %v1165 = vunpack.c.l.b16 %v216
    %v1166 = vunpack.c.l.b16 %v217
    %v1167 = vunpack.c.l.b16 %v218
    %v1168 = vunpack.c.l.b16 %v219
    %v1169 = vunpack.c.l.b16 %v220
    %v1170 = vunpack.c.l.b16 %v221
    %v1171 = vunpack.c.l.b16 %v222
    %v1172 = vunpack.c.l.b16 %v223
    %v1173 = vunpack.c.l.b16 %v224
    %v1174 = vunpack.c.l.b16 %v225
    %v1175 = vunpack.c.l.b16 %v226
    %v1176 = vunpack.c.l.b16 %v227
    %v1177 = vunpack.c.l.b16 %v228
    %v1178 = vunpack.c.l.b16 %v229
    %v1179 = vunpack.c.l.b16 %v230
    %v1180 = vunpack.c.l.b16 %v231
    %v1181 = vunpack.c.l.b16 %v232
    %v1182 = vunpack.c.l.b16 %v233
    %v1183 = vunpack.c.l.b16 %v234
    %v1184 = vunpack.c.l.b16 %v235
    %v1185 = vunpack.c.l.b16 %v236
    %v1186 = vunpack.c.l.b16 %v237
    %v1187 = vunpack.c.l.b16 %v238
    %v1188 = vunpack.c.l.b16 %v239
    %v1189 = vunpack.c.l.b16 %v240
    %v1190 = vunpack.c.l.b16 %v241
    %v1191 = vunpack.c.l.b16 %v242
    %v1192 = vunpack.c.l.b16 %v243
    %v1193 = vunpack.c.l.b16 %v244
    %v1194 = vunpack.c.l.b16 %v245
    %v1195 = vunpack.c.l.b16 %v246
    %v1196 = vunpack.c.l.b16 %v247
    %v1197 = vunpack.c.l.b16 %v248
    %v1198 = vunpack.c.l.b16 %v249
    %v1199 = vunpack.c.l.b16 %v250
    %v1200 = vunpack.c.l.b16 %v251
    %v1201 = vunpack.c.l.b16 %v252
    %v1202 = vunpack.c.l.b16 %v253
    %v1203 = vunpack.c.l.b16 %v254
    %v1204 = vunpack.c.l.b16 %v255
    %v1205 = vunpack.c.l.b16 %v256
    %v1206 = vunpack.c.l.b16 %v257
    %v1207 = vunpack.c.l.b16 %v258
    %v1208 = vunpack.c.l.b16 %v259
    %v1209 = vunpack.c.l.b16 %v260
    %v1210 = vunpack.c.l.b16 %v261
    %v1211 = vunpack.c.l.b16 %v262
    %v1212 = vunpack.c.l.b16 %v263
    %v1213 = vunpack.c.l.b16 %v264
    %v1214 = vunpack.c.l.b16 %v265
    %v1215 = vunpack.c.l.b16 %v266
    %v1216 = vunpack.c.l.b16 %v267
    %v1217 = vunpack.c.l.b16 %v268
    %v1218 = vunpack.c.l.b16 %v269
    %v1219 = vunpack.c.l.b16 %v270
    %v1220 = vunpack.c.l.b16 %v271
    %v1221 = vunpack.c.l.b16 %v272
    %v1222 = vunpack.c.l.b16 %v273
    %v1223 = vunpack.c.l.b16 %v274
    %v1224 = vunpack.c.l.b16 %v275
    %v1225 = vunpack.c.l.b16 %v276
    %v1226 = vunpack.c.l.b16 %v277
    %v1227 = vunpack.c.l.b16 %v278
    %v1228 = vunpack.c.l.b16 %v279
    %v1229 = vunpack.c.l.b16 %v280
    %v1230 = vunpack.c.l.b16 %v281
    %v1231 = vunpack.c.l.b16 %v282
    %v1232 = vunpack.c.l.b16 %v283
    %v1233 = vunpack.c.l.b16 %v284
    %v1234 = vunpack.c.l.b16 %v285
    %v1235 = vunpack.c.l.b16 %v286
    %v1236 = vunpack.c.l.b16 %v287
    %v1237 = vunpack.c.l.b16 %v288
    %v1238 = vunpack.c.l.b16 %v289
    %v1239 = vunpack.c.l.b16 %v290
    %v1240 = vunpack.c.l.b16 %v291
    %v1241 = vunpack.c.l.b16 %v292
    %v1242 = vunpack.c.l.b16 %v293
    %v1243 = vunpack.c.l.b16 %v294
    %v1244 = vunpack.c.l.b16 %v295
    %v1245 = vunpack.c.l.b16 %v296
    %v1246 = vunpack.c.l.b16 %v297
    %v1247 = vunpack.c.l.b16 %v298
    %v1248 = vunpack.c.l.b16 %v299
    %v1249 = vunpack.c.l.b16 %v300
    %v1250 = vunpack.c.l.b16 %v301
    %v1251 = vunpack.c.l.b16 %v302
    %v1252 = vunpack.c.l.b16 %v303
    %v1253 = vunpack.c.l.b16 %v304
    %v1254 = vunpack.c.l.b16 %v305
    %v1255 = vunpack.c.l.b16 %v306
    %v1256 = vunpack.c.l.b16 %v307
    %v1257 = vunpack.c.l.b16 %v308
    %v1258 = vunpack.c.l.b16 %v309
    %v1259 = vunpack.c.l.b16 %v310
    %v1260 = vunpack.c.l.b16 %v311
    %v1261 = vunpack.c.l.b16 %v312
    %v1262 = vunpack.c.l.b16 %v313
    %v1263 = vunpack.c.l.b16 %v314
    %v1264 = vunpack.c.l.b16 %v315
    %v1265 = vunpack.c.l.b16 %v316
    %v1266 = vunpack.c.l.b16 %v317
    %v1267 = vunpack.c.l.b16 %v318
    %v1268 = vunpack.c.l.b16 %v319
    %v1269 = vunpack.c.l.b16 %v320
    %v1270 = vunpack.c.l.b16 %v321
    %v1271 = vunpack.c.l.b16 %v322
    %v1272 = vunpack.c.l.b16 %v323
    %v1273 = vunpack.c.l.b16 %v324
    %v1274 = vunpack.c.l.b16 %v325
    %v1275 = vunpack.c.l.b16 %v326
    %v1276 = vunpack.c.l.b16 %v327
    %v1277 = vunpack.c.l.b16 %v328
    %v1278 = vunpack.c.l.b16 %v329
    %v1279 = vunpack.c.l.b16 %v330
    %v1280 = vunpack.c.l.b16 %v331
    %v1281 = vunpack.c.l.b16 %v332
    %v1282 = vunpack.c.l.b16 %v333
    %v1283 = vunpack.c.l.b16 %v334
    %v1284 = vunpack.c.l.b16 %v335
    %v1285 = vunpack.c.l.b16 %v336
    %v1286 = vunpack.c.l.b16 %v337
    %v1287 = vunpack.c.l.b16 %v338
    %v1288 = vunpack.c.l.b16 %v339
    %v1289 = vunpack.c.l.b16 %v340
    %v1290 = vunpack.c.l.b16 %v341
    %v1291 = vunpack.c.l.b16 %v342
    %v1292 = vunpack.c.l.b16 %v343
    %v1293 = vunpack.c.l.b16 %v344
    %v1294 = vunpack.c.l.b16 %v345
    %v1295 = vunpack.c.l.b16 %v346
    %v1296 = vunpack.c.l.b16 %v347
    %v1297 = vunpack.c.l.b16 %v348
    %v1298 = vunpack.c.l.b16 %v349
    %v1299 = vunpack.c.l.b16 %v350
    %v1300 = vunpack.c.l.b16 %v351
    %v1301 = vunpack.c.l.b16 %v352
    %v1302 = vunpack.c.l.b16 %v353
    %v1303 = vunpack.c.l.b16 %v354
    %v1304 = vunpack.c.l.b16 %v355
    %v1305 = vunpack.c.l.b16 %v356
    %v1306 = vunpack.c.l.b16 %v357
    %v1307 = vunpack.c.l.b16 %v358
    %v1308 = vunpack.c.l.b16 %v359
    %v1309 = vunpack.c.l.b16 %v360
    %v1310 = vunpack.c.l.b16 %v361
    %v1311 = vunpack.c.l.b16 %v362
    %v1312 = vunpack.c.l.b16 %v363
    %v1313 = vunpack.c.l.b16 %v364
    %v1314 = vunpack.c.l.b16 %v365
    %v1315 = vunpack.c.l.b16 %v366
    %v1316 = vunpack.c.l.b16 %v367
    %v1317 = vunpack.c.l.b16 %v368
    %v1318 = vunpack.c.l.b16 %v369
    %v1319 = vunpack.c.l.b16 %v370
    %v1320 = vunpack.c.l.b16 %v371
    %v1321 = vunpack.c.l.b16 %v372
    %v1322 = vunpack.c.l.b16 %v373
    %v1323 = vunpack.c.l.b16 %v374
    %v1324 = vunpack.c.l.b16 %v375
    %v1325 = vunpack.c.l.b16 %v376
    %v1326 = vunpack.c.l.b16 %v377
    %v1327 = vunpack.c.l.b16 %v378
    %v1328 = vunpack.c.l.b16 %v379
    %v1329 = vunpack.c.l.b16 %v380
    %v1330 = vunpack.c.l.b16 %v381
    %v1331 = vunpack.c.l.b16 %v382
    %v1332 = vunpack.c.l.b16 %v383
    %v1333 = vunpack.c.l.b16 %v384
    %v1334 = vunpack.c.l.b16 %v385
    %v1335 = vunpack.c.l.b16 %v386
    %v1336 = vunpack.c.l.b16 %v387
    %v1337 = vunpack.c.l.b16 %v388
    %v1338 = vunpack.c.l.b16 %v389
    %v1339 = vunpack.c.l.b16 %v390
    %v1340 = vunpack.c.l.b16 %v391
    %v1341 = vunpack.c.l.b16 %v392
    %v1342 = vunpack.c.l.b16 %v393
    %v1343 = vunpack.c.l.b16 %v394
    %v1344 = vunpack.c.l.b16 %v395
    %v1345 = vunpack.c.l.b16 %v396
    %v1346 = vunpack.c.l.b16 %v397
    %v1347 = vunpack.c.l.b16 %v398
    %v1348 = vunpack.c.l.b16 %v399
    %v1349 = vunpack.c.l.b16 %v400
    %v1350 = vunpack.c.l.b16 %v401
    %v1351 = vunpack.c.l.b16 %v402
    %v1352 = vpack.c.b16 %v969, %v968
    %v1353 = vpack.c.b16 %v971, %v970
    %v1354 = vpack.c.b16 %v973, %v972
    %v1355 = vpack.c.b16 %v975, %v974
    %v1356 = vpack.c.b16 %v977, %v976
    %v1357 = vpack.c.b16 %v979, %v978
    %v1358 = vpack.c.b16 %v981, %v980
    %v1359 = vpack.c.b16 %v983, %v982
    %v1360 = vpack.c.b16 %v985, %v984
    %v1361 = vpack.c.b16 %v987, %v986
    %v1362 = vpack.c.b16 %v989, %v988
    %v1363 = vpack.c.b16 %v991, %v990
    %v1364 = vpack.c.b16 %v993, %v992
    %v1365 = vpack.c.b16 %v995, %v994
    %v1366 = vpack.c.b16 %v997, %v996
    %v1367 = vpack.c.b16 %v999, %v998
    %v1368 = vpack.c.b16 %v1001, %v1000
    %v1369 = vpack.c.b16 %v1003, %v1002
    %v1370 = vpack.c.b16 %v1005, %v1004
    %v1371 = vpack.c.b16 %v1007, %v1006
    %v1372 = vpack.c.b16 %v1009, %v1008
    %v1373 = vpack.c.b16 %v1011, %v1010
    %v1374 = vpack.c.b16 %v1013, %v1012
    %v1375 = vpack.c.b16 %v1015, %v1014
    %v1376 = vpack.c.b16 %v1017, %v1016
    %v1377 = vpack.c.b16 %v1019, %v1018
    %v1378 = vpack.c.b16 %v1021, %v1020
    %v1379 = vpack.c.b16 %v1023, %v1022
    %v1380 = vpack.c.b16 %v1025, %v1024
    %v1381 = vpack.c.b16 %v1027, %v1026
    %v1382 = vpack.c.b16 %v1029, %v1028
    %v1383 = vpack.c.b16 %v1031, %v1030
    %v1384 = vpack.c.b16 %v1033, %v1032
    %v1385 = vpack.c.b16 %v1035, %v1034
    %v1386 = vpack.c.b16 %v1037, %v1036
    %v1387 = vpack.c.b16 %v1039, %v1038
    %v1388 = vpack.c.b16 %v1041, %v1040
    %v1389 = vpack.c.b16 %v1043, %v1042
    %v1390 = vpack.c.b16 %v1045, %v1044
    %v1391 = vpack.c.b16 %v1047, %v1046
    %v1392 = vpack.c.b16 %v1049, %v1048
    %v1393 = vpack.c.b16 %v1051, %v1050
    %v1394 = vpack.c.b16 %v1053, %v1052
    %v1395 = vpack.c.b16 %v1055, %v1054
    %v1396 = vpack.c.b16 %v1057, %v1056
    %v1397 = vpack.c.b16 %v1059, %v1058
    %v1398 = vpack.c.b16 %v1061, %v1060
    %v1399 = vpack.c.b16 %v1063, %v1062
    %v1400 = vpack.c.b16 %v1065, %v1064
    %v1401 = vpack.c.b16 %v1067, %v1066
    %v1402 = vpack.c.b16 %v1069, %v1068
    %v1403 = vpack.c.b16 %v1071, %v1070
    %v1404 = vpack.c.b16 %v1073, %v1072
    %v1405 = vpack.c.b16 %v1075, %v1074
    %v1406 = vpack.c.b16 %v1077, %v1076
    %v1407 = vpack.c.b16 %v1079, %v1078
    %v1408 = vpack.c.b16 %v1081, %v1080
    %v1409 = vpack.c.b16 %v1083, %v1082
    %v1410 = vpack.c.b16 %v1085, %v1084
    %v1411 = vpack.c.b16 %v1087, %v1086
    %v1412 = vpack.c.b16 %v1089, %v1088
    %v1413 = vpack.c.b16 %v1091, %v1090
    %v1414 = vpack.c.b16 %v1093, %v1092
    %v1415 = vpack.c.b16 %v1095, %v1094
    %v1416 = vpack.c.b16 %v1097, %v1096
    %v1417 = vpack.c.b16 %v1099, %v1098
    %v1418 = vpack.c.b16 %v1101, %v1100
    %v1419 = vpack.c.b16 %v1103, %v1102
    %v1420 = vpack.c.b16 %v1105, %v1104
    %v1421 = vpack.c.b16 %v1107, %v1106
    %v1422 = vpack.c.b16 %v1109, %v1108
    %v1423 = vpack.c.b16 %v1111, %v1110
    %v1424 = vpack.c.b16 %v1113, %v1112
    %v1425 = vpack.c.b16 %v1115, %v1114
    %v1426 = vpack.c.b16 %v1117, %v1116
    %v1427 = vpack.c.b16 %v1119, %v1118
    %v1428 = vpack.c.b16 %v1121, %v1120
    %v1429 = vpack.c.b16 %v1123, %v1122
    %v1430 = vpack.c.b16 %v1125, %v1124
    %v1431 = vpack.c.b16 %v1127, %v1126
    %v1432 = vpack.c.b16 %v1129, %v1128
    %v1433 = vpack.c.b16 %v1131, %v1130
    %v1434 = vpack.c.b16 %v1133, %v1132
    %v1435 = vpack.c.b16 %v1135, %v1134
    %v1436 = vpack.c.b16 %v1137, %v1136
    %v1437 = vpack.c.b16 %v1139, %v1138
    %v1438 = vpack.c.b16 %v1141, %v1140
    %v1439 = vpack.c.b16 %v1143, %v1142
    %v1440 = vpack.c.b16 %v1145, %v1144
    %v1441 = vpack.c.b16 %v1147, %v1146
    %v1442 = vpack.c.b16 %v1149, %v1148
    %v1443 = vpack.c.b16 %v1151, %v1150
    %v1444 = vpack.c.b16 %v1153, %v1152
    %v1445 = vpack.c.b16 %v1155, %v1154
    %v1446 = vpack.c.b16 %v1157, %v1156
    %v1447 = vpack.c.b16 %v1159, %v1158
    %v1448 = vpack.c.b16 %v1161, %v1160
    %v1449 = vpack.c.b16 %v1163, %v1162
    %v1450 = vpack.c.b16 %v1165, %v1164
    %v1451 = vpack.c.b16 %v1167, %v1166
    %v1452 = vpack.c.b16 %v1169, %v1168
    %v1453 = vpack.c.b16 %v1171, %v1170
    %v1454 = vpack.c.b16 %v1173, %v1172
    %v1455 = vpack.c.b16 %v1175, %v1174
    %v1456 = vpack.c.b16 %v1177, %v1176
    %v1457 = vpack.c.b16 %v1179, %v1178
    %v1458 = vpack.c.b16 %v1181, %v1180
    %v1459 = vpack.c.b16 %v1183, %v1182
    %v1460 = vpack.c.b16 %v1185, %v1184
    %v1461 = vpack.c.b16 %v1187, %v1186
    %v1462 = vpack.c.b16 %v1189, %v1188
    %v1463 = vpack.c.b16 %v1191, %v1190
    %v1464 = vpack.c.b16 %v1193, %v1192
    %v1465 = vpack.c.b16 %v1195, %v1194
    %v1466 = vpack.c.b16 %v1197, %v1196
    %v1467 = vpack.c.b16 %v1199, %v1198
    %v1468 = vpack.c.b16 %v1201, %v1200
    %v1469 = vpack.c.b16 %v1203, %v1202
    %v1470 = vpack.c.b16 %v1205, %v1204
    %v1471 = vpack.c.b16 %v1207, %v1206
    %v1472 = vpack.c.b16 %v1209, %v1208
    %v1473 = vpack.c.b16 %v1211, %v1210
    %v1474 = vpack.c.b16 %v1213, %v1212
    %v1475 = vpack.c.b16 %v1215, %v1214
    %v1476 = vpack.c.b16 %v1217, %v1216
    %v1477 = vpack.c.b16 %v1219, %v1218
    %v1478 = vpack.c.b16 %v1221, %v1220
    %v1479 = vpack.c.b16 %v1223, %v1222
    %v1480 = vpack.c.b16 %v1225, %v1224
    %v1481 = vpack.c.b16 %v1227, %v1226
    %v1482 = vpack.c.b16 %v1229, %v1228
    %v1483 = vpack.c.b16 %v1231, %v1230
    %v1484 = vpack.c.b16 %v1233, %v1232
    %v1485 = vpack.c.b16 %v1235, %v1234
    %v1486 = vpack.c.b16 %v1237, %v1236
    %v1487 = vpack.c.b16 %v1239, %v1238
    %v1488 = vpack.c.b16 %v1241, %v1240
    %v1489 = vpack.c.b16 %v1243, %v1242
    %v1490 = vpack.c.b16 %v1245, %v1244
    %v1491 = vpack.c.b16 %v1247, %v1246
    %v1492 = vpack.c.b16 %v1249, %v1248
    %v1493 = vpack.c.b16 %v1251, %v1250
    %v1494 = vpack.c.b16 %v1253, %v1252
    %v1495 = vpack.c.b16 %v1255, %v1254
    %v1496 = vpack.c.b16 %v1257, %v1256
    %v1497 = vpack.c.b16 %v1259, %v1258
    %v1498 = vpack.c.b16 %v1261, %v1260
    %v1499 = vpack.c.b16 %v1263, %v1262
    %v1500 = vpack.c.b16 %v1265, %v1264
    %v1501 = vpack.c.b16 %v1267, %v1266
    %v1502 = vpack.c.b16 %v1269, %v1268
    %v1503 = vpack.c.b16 %v1271, %v1270
    %v1504 = vpack.c.b16 %v1273, %v1272
    %v1505 = vpack.c.b16 %v1275, %v1274
    %v1506 = vpack.c.b16 %v1277, %v1276
    %v1507 = vpack.c.b16 %v1279, %v1278
    %v1508 = vpack.c.b16 %v1281, %v1280
    %v1509 = vpack.c.b16 %v1283, %v1282
    %v1510 = vpack.c.b16 %v1285, %v1284
    %v1511 = vpack.c.b16 %v1287, %v1286
    %v1512 = vpack.c.b16 %v1289, %v1288
    %v1513 = vpack.c.b16 %v1291, %v1290
    %v1514 = vpack.c.b16 %v1293, %v1292
    %v1515 = vpack.c.b16 %v1295, %v1294
    %v1516 = vpack.c.b16 %v1297, %v1296
    %v1517 = vpack.c.b16 %v1299, %v1298
    %v1518 = vpack.c.b16 %v1301, %v1300
    %v1519 = vpack.c.b16 %v1303, %v1302
    %v1520 = vpack.c.b16 %v1305, %v1304
    %v1521 = vpack.c.b16 %v1307, %v1306
    %v1522 = vpack.c.b16 %v1309, %v1308
    %v1523 = vpack.c.b16 %v1311, %v1310
    %v1524 = vpack.c.b16 %v1313, %v1312
    %v1525 = vpack.c.b16 %v1315, %v1314
    %v1526 = vpack.c.b16 %v1317, %v1316
    %v1527 = vpack.c.b16 %v1319, %v1318
    %v1528 = vpack.c.b16 %v1321, %v1320
    %v1529 = vpack.c.b16 %v1323, %v1322
    %v1530 = vpack.c.b16 %v1325, %v1324
    %v1531 = vpack.c.b16 %v1327, %v1326
    %v1532 = vpack.c.b16 %v1329, %v1328
    %v1533 = vpack.c.b16 %v1331, %v1330
    %v1534 = vpack.c.b16 %v1333, %v1332
    %v1535 = vpack.c.b16 %v1335, %v1334
    %v1536 = vpack.c.b16 %v1337, %v1336
    %v1537 = vpack.c.b16 %v1339, %v1338
    %v1538 = vpack.c.b16 %v1341, %v1340
    %v1539 = vpack.c.b16 %v1343, %v1342
    %v1540 = vpack.c.b16 %v1345, %v1344
    %v1541 = vpack.c.b16 %v1347, %v1346
    %v1542 = vpack.c.b16 %v1349, %v1348
    %v1543 = vpack.c.b16 %v1351, %v1350
    %1736 = vmatprep.subr.bf16.mxu0 0
    %1737 = vmatpush1.bf16.msra.mxu0 %v1352
    %1738 = vmatprep.subr.bf16.mxu0 0
    %1739 = vmatpush1.bf16.msra.mxu0 %v1353
    %1740 = vmatprep.subr.bf16.mxu0 0
    %1741 = vmatpush1.bf16.msra.mxu0 %v1354
    %1742 = vmatprep.subr.bf16.mxu0 0
    %1743 = vmatpush1.bf16.msra.mxu0 %v1355
    %1744 = vmatprep.subr.bf16.mxu0 0
    %1745 = vmatpush1.bf16.msra.mxu0 %v1356
    %1746 = vmatprep.subr.bf16.mxu0 0
    %1747 = vmatpush1.bf16.msra.mxu0 %v1357
    %1748 = vmatprep.subr.bf16.mxu0 0
    %1749 = vmatpush1.bf16.msra.mxu0 %v1358
    %1750 = vmatprep.subr.bf16.mxu0 0
    %1751 = vmatpush1.bf16.msra.mxu0 %v1359
    %1752 = vmatprep.subr.bf16.mxu0 0
    %1753 = vmatpush1.bf16.msra.mxu0 %v1360
    %1754 = vmatprep.subr.bf16.mxu0 0
    %1755 = vmatpush1.bf16.msra.mxu0 %v1361
    %1756 = vmatprep.subr.bf16.mxu0 0
    %1757 = vmatpush1.bf16.msra.mxu0 %v1362
    %1758 = vmatprep.subr.bf16.mxu0 0
    %1759 = vmatpush1.bf16.msra.mxu0 %v1363
    %1760 = vmatprep.subr.bf16.mxu0 0
    %1761 = vmatpush1.bf16.msra.mxu0 %v1364
    %1762 = vmatprep.subr.bf16.mxu0 0
    %1763 = vmatpush1.bf16.msra.mxu0 %v1365
    %1764 = vmatprep.subr.bf16.mxu0 0
    %1765 = vmatpush1.bf16.msra.mxu0 %v1366
    %1766 = vmatprep.subr.bf16.mxu0 0
    %1767 = vmatpush1.bf16.msra.mxu0 %v1367
    %1768 = vmatprep.mubr.bf16.mxu0 %v450
    %1769 = vmatmul.mubr.bf16.gmra.mrb[0].mxu0 %v436
    %v1770 = vpop.f32.mrb[0].mxu0
    %v1771 = vadd.f32 %v408, %v1770
    %v1772 = vpop.f32.mrb[0].mxu0
    %v1773 = vpop.f32.mrb[0].mxu0
    %v1774 = vpop.f32.mrb[0].mxu0
    %1775 = vdwg.mxu0
    %1776 = vmatprep.subr.bf16.mxu0 0
    %1777 = vmatpush1.bf16.msra.mxu0 %v1368
    %1778 = vmatprep.subr.bf16.mxu0 0
    %1779 = vmatpush1.bf16.msra.mxu0 %v1369
    %1780 = vmatprep.subr.bf16.mxu0 0
    %1781 = vmatpush1.bf16.msra.mxu0 %v1370
    %1782 = vmatprep.subr.bf16.mxu0 0
    %1783 = vmatpush1.bf16.msra.mxu0 %v1371
    %1784 = vmatprep.subr.bf16.mxu0 0
    %1785 = vmatpush1.bf16.msra.mxu0 %v1372
    %1786 = vmatprep.subr.bf16.mxu0 0
    %1787 = vmatpush1.bf16.msra.mxu0 %v1373
    %1788 = vmatprep.subr.bf16.mxu0 0
    %1789 = vmatpush1.bf16.msra.mxu0 %v1374
    %1790 = vmatprep.subr.bf16.mxu0 0
    %1791 = vmatpush1.bf16.msra.mxu0 %v1375
    %1792 = vmatprep.subr.bf16.mxu0 0
    %1793 = vmatpush1.bf16.msra.mxu0 %v1376
    %1794 = vmatprep.subr.bf16.mxu0 0
    %1795 = vmatpush1.bf16.msra.mxu0 %v1377
    %1796 = vmatprep.subr.bf16.mxu0 0
    %1797 = vmatpush1.bf16.msra.mxu0 %v1378
    %1798 = vmatprep.subr.bf16.mxu0 0
    %1799 = vmatpush1.bf16.msra.mxu0 %v1379
    %1800 = vmatprep.subr.bf16.mxu0 0
    %1801 = vmatpush1.bf16.msra.mxu0 %v1380
    %1802 = vmatprep.subr.bf16.mxu0 0
    %1803 = vmatpush1.bf16.msra.mxu0 %v1381
    %1804 = vmatprep.subr.bf16.mxu0 0
    %1805 = vmatpush1.bf16.msra.mxu0 %v1382
    %1806 = vmatprep.subr.bf16.mxu0 0
    %1807 = vmatpush1.bf16.msra.mxu0 %v1383
    %1808 = vmatprep.mubr.bf16.mxu0 %v460
    %1809 = vmatmul.mubr.bf16.gmra.mrb[0].mxu0 %v458
    %v1810 = vpop.f32.mrb[0].mxu0
    %v1811 = vadd.f32 %v1771, %v1810
    %v1812 = vpop.f32.mrb[0].mxu0
    %v1813 = vpop.f32.mrb[0].mxu0
    %v1814 = vpop.f32.mrb[0].mxu0
    %1815 = vdwg.mxu0
    %1816 = vmatprep.subr.bf16.mxu0 0
    %1817 = vmatpush1.bf16.msra.mxu0 %v1384
    %1818 = vmatprep.subr.bf16.mxu0 0
    %1819 = vmatpush1.bf16.msra.mxu0 %v1385
    %1820 = vmatprep.subr.bf16.mxu0 0
    %1821 = vmatpush1.bf16.msra.mxu0 %v1386
    %1822 = vmatprep.subr.bf16.mxu0 0
    %1823 = vmatpush1.bf16.msra.mxu0 %v1387
    %1824 = vmatprep.subr.bf16.mxu0 0
    %1825 = vmatpush1.bf16.msra.mxu0 %v1388
    %1826 = vmatprep.subr.bf16.mxu0 0
    %1827 = vmatpush1.bf16.msra.mxu0 %v1389
    %1828 = vmatprep.subr.bf16.mxu0 0
    %1829 = vmatpush1.bf16.msra.mxu0 %v1390
    %1830 = vmatprep.subr.bf16.mxu0 0
    %1831 = vmatpush1.bf16.msra.mxu0 %v1391
    %1832 = vmatprep.subr.bf16.mxu0 0
    %1833 = vmatpush1.bf16.msra.mxu0 %v1392
    %1834 = vmatprep.subr.bf16.mxu0 0
    %1835 = vmatpush1.bf16.msra.mxu0 %v1393
    %1836 = vmatprep.subr.bf16.mxu0 0
    %1837 = vmatpush1.bf16.msra.mxu0 %v1394
    %1838 = vmatprep.subr.bf16.mxu0 0
    %1839 = vmatpush1.bf16.msra.mxu0 %v1395
    %1840 = vmatprep.subr.bf16.mxu0 0
    %1841 = vmatpush1.bf16.msra.mxu0 %v1396
    %1842 = vmatprep.subr.bf16.mxu0 0
    %1843 = vmatpush1.bf16.msra.mxu0 %v1397
    %1844 = vmatprep.subr.bf16.mxu0 0
    %1845 = vmatpush1.bf16.msra.mxu0 %v1398
    %1846 = vmatprep.subr.bf16.mxu0 0
    %1847 = vmatpush1.bf16.msra.mxu0 %v1399
    %1848 = vmatprep.mubr.bf16.mxu0 %v457
    %1849 = vmatmul.mubr.bf16.gmra.mrb[0].mxu0 %v443
    %v1850 = vpop.f32.mrb[0].mxu0
    %v1851 = vadd.f32 %v1811, %v1850
    %v1852 = vpop.f32.mrb[0].mxu0
    %v1853 = vpop.f32.mrb[0].mxu0
    %v1854 = vpop.f32.mrb[0].mxu0
    %1855 = vdwg.mxu0
    %1856 = vmatprep.subr.bf16.mxu0 0
    %1857 = vmatpush1.bf16.msra.mxu0 %v1400
    %1858 = vmatprep.subr.bf16.mxu0 0
    %1859 = vmatpush1.bf16.msra.mxu0 %v1401
    %1860 = vmatprep.subr.bf16.mxu0 0
    %1861 = vmatpush1.bf16.msra.mxu0 %v1402
    %1862 = vmatprep.subr.bf16.mxu0 0
    %1863 = vmatpush1.bf16.msra.mxu0 %v1403
    %1864 = vmatprep.subr.bf16.mxu0 0
    %1865 = vmatpush1.bf16.msra.mxu0 %v1404
    %1866 = vmatprep.subr.bf16.mxu0 0
    %1867 = vmatpush1.bf16.msra.mxu0 %v1405
    %1868 = vmatprep.subr.bf16.mxu0 0
    %1869 = vmatpush1.bf16.msra.mxu0 %v1406
    %1870 = vmatprep.subr.bf16.mxu0 0
    %1871 = vmatpush1.bf16.msra.mxu0 %v1407
    %1872 = vmatprep.subr.bf16.mxu0 0
    %1873 = vmatpush1.bf16.msra.mxu0 %v1408
    %1874 = vmatprep.subr.bf16.mxu0 0
    %1875 = vmatpush1.bf16.msra.mxu0 %v1409
    %1876 = vmatprep.subr.bf16.mxu0 0
    %1877 = vmatpush1.bf16.msra.mxu0 %v1410
    %1878 = vmatprep.subr.bf16.mxu0 0
    %1879 = vmatpush1.bf16.msra.mxu0 %v1411
    %1880 = vmatprep.subr.bf16.mxu0 0
    %1881 = vmatpush1.bf16.msra.mxu0 %v1412
    %1882 = vmatprep.subr.bf16.mxu0 0
    %1883 = vmatpush1.bf16.msra.mxu0 %v1413
    %1884 = vmatprep.subr.bf16.mxu0 0
    %1885 = vmatpush1.bf16.msra.mxu0 %v1414
    %1886 = vmatprep.subr.bf16.mxu0 0
    %1887 = vmatpush1.bf16.msra.mxu0 %v1415
    %1888 = vmatprep.mubr.bf16.mxu0 %v461
    %1889 = vmatmul.mubr.bf16.gmra.mrb[0].mxu0 %v459
    %v1890 = vpop.f32.mrb[0].mxu0
    %v1891 = vadd.f32 %v1851, %v1890
    %v1892 = vpop.f32.mrb[0].mxu0
    %v1893 = vpop.f32.mrb[0].mxu0
    %v1894 = vpop.f32.mrb[0].mxu0
    %1895 = vdwg.mxu0
    %1896 = vmatprep.subr.bf16.mxu0 0
    %1897 = vmatpush1.bf16.msra.mxu0 %v1416
    %1898 = vmatprep.subr.bf16.mxu0 0
    %1899 = vmatpush1.bf16.msra.mxu0 %v1417
    %1900 = vmatprep.subr.bf16.mxu0 0
    %1901 = vmatpush1.bf16.msra.mxu0 %v1418
    %1902 = vmatprep.subr.bf16.mxu0 0
    %1903 = vmatpush1.bf16.msra.mxu0 %v1419
    %1904 = vmatprep.subr.bf16.mxu0 0
    %1905 = vmatpush1.bf16.msra.mxu0 %v1420
    %1906 = vmatprep.subr.bf16.mxu0 0
    %1907 = vmatpush1.bf16.msra.mxu0 %v1421
    %1908 = vmatprep.subr.bf16.mxu0 0
    %1909 = vmatpush1.bf16.msra.mxu0 %v1422
    %1910 = vmatprep.subr.bf16.mxu0 0
    %1911 = vmatpush1.bf16.msra.mxu0 %v1423
    %1912 = vmatprep.subr.bf16.mxu0 0
    %1913 = vmatpush1.bf16.msra.mxu0 %v1424
    %1914 = vmatprep.subr.bf16.mxu0 0
    %1915 = vmatpush1.bf16.msra.mxu0 %v1425
    %1916 = vmatprep.subr.bf16.mxu0 0
    %1917 = vmatpush1.bf16.msra.mxu0 %v1426
    %1918 = vmatprep.subr.bf16.mxu0 0
    %1919 = vmatpush1.bf16.msra.mxu0 %v1427
    %1920 = vmatprep.subr.bf16.mxu0 0
    %1921 = vmatpush1.bf16.msra.mxu0 %v1428
    %1922 = vmatprep.subr.bf16.mxu0 0
    %1923 = vmatpush1.bf16.msra.mxu0 %v1429
    %1924 = vmatprep.subr.bf16.mxu0 0
    %1925 = vmatpush1.bf16.msra.mxu0 %v1430
    %1926 = vmatprep.subr.bf16.mxu0 0
    %1927 = vmatpush1.bf16.msra.mxu0 %v1431
    %1928 = vmatprep.mubr.bf16.mxu0 %v499
    %1929 = vmatmul.mubr.bf16.gmra.mrb[0].mxu0 %v485
    %v1930 = vpop.f32.mrb[0].mxu0
    %v1931 = vadd.f32 %v1891, %v1930
    %v1932 = vpop.f32.mrb[0].mxu0
    %v1933 = vpop.f32.mrb[0].mxu0
    %v1934 = vpop.f32.mrb[0].mxu0
    %1935 = vdwg.mxu0
    %1936 = vmatprep.subr.bf16.mxu0 0
    %1937 = vmatpush1.bf16.msra.mxu0 %v1432
    %1938 = vmatprep.subr.bf16.mxu0 0
    %1939 = vmatpush1.bf16.msra.mxu0 %v1433
    %1940 = vmatprep.subr.bf16.mxu0 0
    %1941 = vmatpush1.bf16.msra.mxu0 %v1434
    %1942 = vmatprep.subr.bf16.mxu0 0
    %1943 = vmatpush1.bf16.msra.mxu0 %v1435
    %1944 = vmatprep.subr.bf16.mxu0 0
    %1945 = vmatpush1.bf16.msra.mxu0 %v1436
    %1946 = vmatprep.subr.bf16.mxu0 0
    %1947 = vmatpush1.bf16.msra.mxu0 %v1437
    %1948 = vmatprep.subr.bf16.mxu0 0
    %1949 = vmatpush1.bf16.msra.mxu0 %v1438
    %1950 = vmatprep.subr.bf16.mxu0 0
    %1951 = vmatpush1.bf16.msra.mxu0 %v1439
    %1952 = vmatprep.subr.bf16.mxu0 0
    %1953 = vmatpush1.bf16.msra.mxu0 %v1440
    %1954 = vmatprep.subr.bf16.mxu0 0
    %1955 = vmatpush1.bf16.msra.mxu0 %v1441
    %1956 = vmatprep.subr.bf16.mxu0 0
    %1957 = vmatpush1.bf16.msra.mxu0 %v1442
    %1958 = vmatprep.subr.bf16.mxu0 0
    %1959 = vmatpush1.bf16.msra.mxu0 %v1443
    %1960 = vmatprep.subr.bf16.mxu0 0
    %1961 = vmatpush1.bf16.msra.mxu0 %v1444
    %1962 = vmatprep.subr.bf16.mxu0 0
    %1963 = vmatpush1.bf16.msra.mxu0 %v1445
    %1964 = vmatprep.subr.bf16.mxu0 0
    %1965 = vmatpush1.bf16.msra.mxu0 %v1446
    %1966 = vmatprep.subr.bf16.mxu0 0
    %1967 = vmatpush1.bf16.msra.mxu0 %v1447
    %1968 = vmatprep.mubr.bf16.mxu0 %v509
    %1969 = vmatmul.mubr.bf16.gmra.mrb[0].mxu0 %v507
    %v1970 = vpop.f32.mrb[0].mxu0
    %v1971 = vadd.f32 %v1931, %v1970
    %v1972 = vpop.f32.mrb[0].mxu0
    %v1973 = vpop.f32.mrb[0].mxu0
    %v1974 = vpop.f32.mrb[0].mxu0
    %1975 = vdwg.mxu0
    %1976 = vmatprep.subr.bf16.mxu0 0
    %1977 = vmatpush1.bf16.msra.mxu0 %v1448
    %1978 = vmatprep.subr.bf16.mxu0 0
    %1979 = vmatpush1.bf16.msra.mxu0 %v1449
    %1980 = vmatprep.subr.bf16.mxu0 0
    %1981 = vmatpush1.bf16.msra.mxu0 %v1450
    %1982 = vmatprep.subr.bf16.mxu0 0
    %1983 = vmatpush1.bf16.msra.mxu0 %v1451
    %1984 = vmatprep.subr.bf16.mxu0 0
    %1985 = vmatpush1.bf16.msra.mxu0 %v1452
    %1986 = vmatprep.subr.bf16.mxu0 0
    %1987 = vmatpush1.bf16.msra.mxu0 %v1453
    %1988 = vmatprep.subr.bf16.mxu0 0
    %1989 = vmatpush1.bf16.msra.mxu0 %v1454
    %1990 = vmatprep.subr.bf16.mxu0 0
    %1991 = vmatpush1.bf16.msra.mxu0 %v1455
    %1992 = vmatprep.subr.bf16.mxu0 0
    %1993 = vmatpush1.bf16.msra.mxu0 %v1456
    %1994 = vmatprep.subr.bf16.mxu0 0
    %1995 = vmatpush1.bf16.msra.mxu0 %v1457
    %1996 = vmatprep.subr.bf16.mxu0 0
    %1997 = vmatpush1.bf16.msra.mxu0 %v1458
    %1998 = vmatprep.subr.bf16.mxu0 0
    %1999 = vmatpush1.bf16.msra.mxu0 %v1459
    %2000 = vmatprep.subr.bf16.mxu0 0
    %2001 = vmatpush1.bf16.msra.mxu0 %v1460
    %2002 = vmatprep.subr.bf16.mxu0 0
    %2003 = vmatpush1.bf16.msra.mxu0 %v1461
    %2004 = vmatprep.subr.bf16.mxu0 0
    %2005 = vmatpush1.bf16.msra.mxu0 %v1462
    %2006 = vmatprep.subr.bf16.mxu0 0
    %2007 = vmatpush1.bf16.msra.mxu0 %v1463
    %2008 = vmatprep.mubr.bf16.mxu0 %v506
    %2009 = vmatmul.mubr.bf16.gmra.mrb[0].mxu0 %v492
    %v2010 = vpop.f32.mrb[0].mxu0
    %v2011 = vadd.f32 %v1971, %v2010
    %v2012 = vpop.f32.mrb[0].mxu0
    %v2013 = vpop.f32.mrb[0].mxu0
    %v2014 = vpop.f32.mrb[0].mxu0
    %2015 = vdwg.mxu0
    %2016 = vmatprep.subr.bf16.mxu0 0
    %2017 = vmatpush1.bf16.msra.mxu0 %v1464
    %2018 = vmatprep.subr.bf16.mxu0 0
    %2019 = vmatpush1.bf16.msra.mxu0 %v1465
    %2020 = vmatprep.subr.bf16.mxu0 0
    %2021 = vmatpush1.bf16.msra.mxu0 %v1466
    %2022 = vmatprep.subr.bf16.mxu0 0
    %2023 = vmatpush1.bf16.msra.mxu0 %v1467
    %2024 = vmatprep.subr.bf16.mxu0 0
    %2025 = vmatpush1.bf16.msra.mxu0 %v1468
    %2026 = vmatprep.subr.bf16.mxu0 0
    %2027 = vmatpush1.bf16.msra.mxu0 %v1469
    %2028 = vmatprep.subr.bf16.mxu0 0
    %2029 = vmatpush1.bf16.msra.mxu0 %v1470
    %2030 = vmatprep.subr.bf16.mxu0 0
    %2031 = vmatpush1.bf16.msra.mxu0 %v1471
    %2032 = vmatprep.subr.bf16.mxu0 0
    %2033 = vmatpush1.bf16.msra.mxu0 %v1472
    %2034 = vmatprep.subr.bf16.mxu0 0
    %2035 = vmatpush1.bf16.msra.mxu0 %v1473
    %2036 = vmatprep.subr.bf16.mxu0 0
    %2037 = vmatpush1.bf16.msra.mxu0 %v1474
    %2038 = vmatprep.subr.bf16.mxu0 0
    %2039 = vmatpush1.bf16.msra.mxu0 %v1475
    %2040 = vmatprep.subr.bf16.mxu0 0
    %2041 = vmatpush1.bf16.msra.mxu0 %v1476
    %2042 = vmatprep.subr.bf16.mxu0 0
    %2043 = vmatpush1.bf16.msra.mxu0 %v1477
    %2044 = vmatprep.subr.bf16.mxu0 0
    %2045 = vmatpush1.bf16.msra.mxu0 %v1478
    %2046 = vmatprep.subr.bf16.mxu0 0
    %2047 = vmatpush1.bf16.msra.mxu0 %v1479
    %2048 = vmatprep.mubr.bf16.mxu0 %v510
    %2049 = vmatmul.mubr.bf16.gmra.mrb[0].mxu0 %v508
    %v2050 = vpop.f32.mrb[0].mxu0
    %v2051 = vadd.f32 %v2011, %v2050
    %v2052 = vpop.f32.mrb[0].mxu0
    %v2053 = vpop.f32.mrb[0].mxu0
    %v2054 = vpop.f32.mrb[0].mxu0
    %2055 = vdwg.mxu0
    %2056 = vmatprep.subr.bf16.mxu0 0
    %2057 = vmatpush1.bf16.msra.mxu0 %v1480
    %2058 = vmatprep.subr.bf16.mxu0 0
    %2059 = vmatpush1.bf16.msra.mxu0 %v1481
    %2060 = vmatprep.subr.bf16.mxu0 0
    %2061 = vmatpush1.bf16.msra.mxu0 %v1482
    %2062 = vmatprep.subr.bf16.mxu0 0
    %2063 = vmatpush1.bf16.msra.mxu0 %v1483
    %2064 = vmatprep.subr.bf16.mxu0 0
    %2065 = vmatpush1.bf16.msra.mxu0 %v1484
    %2066 = vmatprep.subr.bf16.mxu0 0
    %2067 = vmatpush1.bf16.msra.mxu0 %v1485
    %2068 = vmatprep.subr.bf16.mxu0 0
    %2069 = vmatpush1.bf16.msra.mxu0 %v1486
    %2070 = vmatprep.subr.bf16.mxu0 0
    %2071 = vmatpush1.bf16.msra.mxu0 %v1487
    %2072 = vmatprep.subr.bf16.mxu0 0
    %2073 = vmatpush1.bf16.msra.mxu0 %v1488
    %2074 = vmatprep.subr.bf16.mxu0 0
    %2075 = vmatpush1.bf16.msra.mxu0 %v1489
    %2076 = vmatprep.subr.bf16.mxu0 0
    %2077 = vmatpush1.bf16.msra.mxu0 %v1490
    %2078 = vmatprep.subr.bf16.mxu0 0
    %2079 = vmatpush1.bf16.msra.mxu0 %v1491
    %2080 = vmatprep.subr.bf16.mxu0 0
    %2081 = vmatpush1.bf16.msra.mxu0 %v1492
    %2082 = vmatprep.subr.bf16.mxu0 0
    %2083 = vmatpush1.bf16.msra.mxu0 %v1493
    %2084 = vmatprep.subr.bf16.mxu0 0
    %2085 = vmatpush1.bf16.msra.mxu0 %v1494
    %2086 = vmatprep.subr.bf16.mxu0 0
    %2087 = vmatpush1.bf16.msra.mxu0 %v1495
    %2088 = vmatprep.mubr.bf16.mxu0 %v548
    %2089 = vmatmul.mubr.bf16.gmra.mrb[0].mxu0 %v534
    %v2090 = vpop.f32.mrb[0].mxu0
    %v2091 = vadd.f32 %v2051, %v2090
    %v2092 = vpop.f32.mrb[0].mxu0
    %v2093 = vpop.f32.mrb[0].mxu0
    %v2094 = vpop.f32.mrb[0].mxu0
    %2095 = vdwg.mxu0
    %2096 = vmatprep.subr.bf16.mxu0 0
    %2097 = vmatpush1.bf16.msra.mxu0 %v1496
    %2098 = vmatprep.subr.bf16.mxu0 0
    %2099 = vmatpush1.bf16.msra.mxu0 %v1497
    %2100 = vmatprep.subr.bf16.mxu0 0
    %2101 = vmatpush1.bf16.msra.mxu0 %v1498
    %2102 = vmatprep.subr.bf16.mxu0 0
    %2103 = vmatpush1.bf16.msra.mxu0 %v1499
    %2104 = vmatprep.subr.bf16.mxu0 0
    %2105 = vmatpush1.bf16.msra.mxu0 %v1500
    %2106 = vmatprep.subr.bf16.mxu0 0
    %2107 = vmatpush1.bf16.msra.mxu0 %v1501
    %2108 = vmatprep.subr.bf16.mxu0 0
    %2109 = vmatpush1.bf16.msra.mxu0 %v1502
    %2110 = vmatprep.subr.bf16.mxu0 0
    %2111 = vmatpush1.bf16.msra.mxu0 %v1503
    %2112 = vmatprep.subr.bf16.mxu0 0
    %2113 = vmatpush1.bf16.msra.mxu0 %v1504
    %2114 = vmatprep.subr.bf16.mxu0 0
    %2115 = vmatpush1.bf16.msra.mxu0 %v1505
    %2116 = vmatprep.subr.bf16.mxu0 0
    %2117 = vmatpush1.bf16.msra.mxu0 %v1506
    %2118 = vmatprep.subr.bf16.mxu0 0
    %2119 = vmatpush1.bf16.msra.mxu0 %v1507
    %2120 = vmatprep.subr.bf16.mxu0 0
    %2121 = vmatpush1.bf16.msra.mxu0 %v1508
    %2122 = vmatprep.subr.bf16.mxu0 0
    %2123 = vmatpush1.bf16.msra.mxu0 %v1509
    %2124 = vmatprep.subr.bf16.mxu0 0
    %2125 = vmatpush1.bf16.msra.mxu0 %v1510
    %2126 = vmatprep.subr.bf16.mxu0 0
    %2127 = vmatpush1.bf16.msra.mxu0 %v1511
    %2128 = vmatprep.mubr.bf16.mxu0 %v558
    %2129 = vmatmul.mubr.bf16.gmra.mrb[0].mxu0 %v556
    %v2130 = vpop.f32.mrb[0].mxu0
    %v2131 = vadd.f32 %v2091, %v2130
    %v2132 = vpop.f32.mrb[0].mxu0
    %v2133 = vpop.f32.mrb[0].mxu0
    %v2134 = vpop.f32.mrb[0].mxu0
    %2135 = vdwg.mxu0
    %2136 = vmatprep.subr.bf16.mxu0 0
    %2137 = vmatpush1.bf16.msra.mxu0 %v1512
    %2138 = vmatprep.subr.bf16.mxu0 0
    %2139 = vmatpush1.bf16.msra.mxu0 %v1513
    %2140 = vmatprep.subr.bf16.mxu0 0
    %2141 = vmatpush1.bf16.msra.mxu0 %v1514
    %2142 = vmatprep.subr.bf16.mxu0 0
    %2143 = vmatpush1.bf16.msra.mxu0 %v1515
    %2144 = vmatprep.subr.bf16.mxu0 0
    %2145 = vmatpush1.bf16.msra.mxu0 %v1516
    %2146 = vmatprep.subr.bf16.mxu0 0
    %2147 = vmatpush1.bf16.msra.mxu0 %v1517
    %2148 = vmatprep.subr.bf16.mxu0 0
    %2149 = vmatpush1.bf16.msra.mxu0 %v1518
    %2150 = vmatprep.subr.bf16.mxu0 0
    %2151 = vmatpush1.bf16.msra.mxu0 %v1519
    %2152 = vmatprep.subr.bf16.mxu0 0
    %2153 = vmatpush1.bf16.msra.mxu0 %v1520
    %2154 = vmatprep.subr.bf16.mxu0 0
    %2155 = vmatpush1.bf16.msra.mxu0 %v1521
    %2156 = vmatprep.subr.bf16.mxu0 0
    %2157 = vmatpush1.bf16.msra.mxu0 %v1522
    %2158 = vmatprep.subr.bf16.mxu0 0
    %2159 = vmatpush1.bf16.msra.mxu0 %v1523
    %2160 = vmatprep.subr.bf16.mxu0 0
    %2161 = vmatpush1.bf16.msra.mxu0 %v1524
    %2162 = vmatprep.subr.bf16.mxu0 0
    %2163 = vmatpush1.bf16.msra.mxu0 %v1525
    %2164 = vmatprep.subr.bf16.mxu0 0
    %2165 = vmatpush1.bf16.msra.mxu0 %v1526
    %2166 = vmatprep.subr.bf16.mxu0 0
    %2167 = vmatpush1.bf16.msra.mxu0 %v1527
    %2168 = vmatprep.mubr.bf16.mxu0 %v555
    %2169 = vmatmul.mubr.bf16.gmra.mrb[0].mxu0 %v541
    %v2170 = vpop.f32.mrb[0].mxu0
    %v2171 = vadd.f32 %v2131, %v2170
    %v2172 = vpop.f32.mrb[0].mxu0
    %v2173 = vpop.f32.mrb[0].mxu0
    %v2174 = vpop.f32.mrb[0].mxu0
    %2175 = vdwg.mxu0
    %2176 = vmatprep.subr.bf16.mxu0 0
    %2177 = vmatpush1.bf16.msra.mxu0 %v1528
    %2178 = vmatprep.subr.bf16.mxu0 0
    %2179 = vmatpush1.bf16.msra.mxu0 %v1529
    %2180 = vmatprep.subr.bf16.mxu0 0
    %2181 = vmatpush1.bf16.msra.mxu0 %v1530
    %2182 = vmatprep.subr.bf16.mxu0 0
    %2183 = vmatpush1.bf16.msra.mxu0 %v1531
    %2184 = vmatprep.subr.bf16.mxu0 0
    %2185 = vmatpush1.bf16.msra.mxu0 %v1532
    %2186 = vmatprep.subr.bf16.mxu0 0
    %2187 = vmatpush1.bf16.msra.mxu0 %v1533
    %2188 = vmatprep.subr.bf16.mxu0 0
    %2189 = vmatpush1.bf16.msra.mxu0 %v1534
    %2190 = vmatprep.subr.bf16.mxu0 0
    %2191 = vmatpush1.bf16.msra.mxu0 %v1535
    %2192 = vmatprep.subr.bf16.mxu0 0
    %2193 = vmatpush1.bf16.msra.mxu0 %v1536
    %2194 = vmatprep.subr.bf16.mxu0 0
    %2195 = vmatpush1.bf16.msra.mxu0 %v1537
    %2196 = vmatprep.subr.bf16.mxu0 0
    %2197 = vmatpush1.bf16.msra.mxu0 %v1538
    %2198 = vmatprep.subr.bf16.mxu0 0
    %2199 = vmatpush1.bf16.msra.mxu0 %v1539
    %2200 = vmatprep.subr.bf16.mxu0 0
    %2201 = vmatpush1.bf16.msra.mxu0 %v1540
    %2202 = vmatprep.subr.bf16.mxu0 0
    %2203 = vmatpush1.bf16.msra.mxu0 %v1541
    %2204 = vmatprep.subr.bf16.mxu0 0
    %2205 = vmatpush1.bf16.msra.mxu0 %v1542
    %2206 = vmatprep.subr.bf16.mxu0 0
    %2207 = vmatpush1.bf16.msra.mxu0 %v1543
    %2208 = vmatprep.mubr.bf16.mxu0 %v559
    %2209 = vmatmul.mubr.bf16.gmra.mrb[0].mxu0 %v557
    %v2210 = vpop.f32.mrb[0].mxu0
    %v2211 = vadd.f32 %v2171, %v2210
    %v2212 = vpop.f32.mrb[0].mxu0
    %v2213 = vpop.f32.mrb[0].mxu0
    %v2214 = vpop.f32.mrb[0].mxu0
    %2215 = vdwg.mxu0
    %vm2216 = vcmask 74752
    %2217 = vst.msk [vmem:[#allocation2] sm:$0x3] %vm2216, %v2211
    // Predicated region
    $region14: #{tpu_custom_call.1} parent=1 // pred_check
      _
    $region15: #{tpu_custom_call.1} parent=1 // pred_check_branch
      %2219 = sbr.rel (0) target = $region17
    $region16: #{tpu_custom_call.1} parent=1 // pred_region
      %s2221 = ssub.s32 32, 32
      %2222 = vsyncadd [#allocation3], %s2221
      %s2224 = sshll.u32 [#allocation2], 4
      %s2225 = int_to_ptr.vmem [resolvable:$true] %s2224
      %2227 = dma.vmem_to_hbm [thread:$0]  %s2225, 32, %s3, [#allocation3]
    $region17: #{tpu_custom_call.1} parent=1 // pred_fallthru
      _
    // Predicated region
    $region18: #{tpu_custom_call.1} parent=1 // pred_check
      _
    $region19: #{tpu_custom_call.1} parent=1 // pred_check_branch
      %2229 = sbr.rel (0) target = $region21
    $region20: #{tpu_custom_call.1} parent=1 // pred_region
      %2230 = dma.done [#allocation3], 32
    $region21: #{tpu_custom_call.1} parent=1 // pred_fallthru
      _
    %2231 = vsyncpa [#allocation3], 1

</llo_original>
